<compile_context>
chip_gen: v7x
topology: tpu7x:2x2x1
jax: 0.10.0
libtpu: 0.0.40
codegen_flags: <defaults>
</compile_context>

<pallas_src>
import functools

import jax
import jax.numpy as jnp
from jax import lax
from jax.experimental import pallas as pl
from jax.experimental.pallas import tpu as pltpu

F32 = jnp.float32
BF16 = jnp.bfloat16


# ---------------------------------------------------------------------------
# in-kernel math helpers
# ---------------------------------------------------------------------------
def _gelu_tanh(x):
    # tanh-approximate GELU (EUP tanh).  Differs from exact-erf nn.GELU() by <~1e-3.
    c = 0.7978845608028654  # sqrt(2/pi)
    return 0.5 * x * (1.0 + jnp.tanh(c * (x + 0.044715 * x * x * x)))


def _layer_norm(x, gamma, beta, eps):
    # One-pass variance: E[x^2] - mu^2 (two independent XLU reductions, no dependency
    # chain through mu before the second reduction).  f32 throughout.
    mu = jnp.mean(x, axis=-1, keepdims=True)
    ex2 = jnp.mean(x * x, axis=-1, keepdims=True)
    var = jnp.maximum(ex2 - mu * mu, 0.0)
    return (x - mu) * lax.rsqrt(var + eps) * gamma + beta


def _vmem_limit_bytes():
    # Leave ~25% headroom for Mosaic scratch / spill (v7x only has 64 MiB physical).
    try:
        return int(pltpu.get_tpu_info().vmem_capacity_bytes * 3 // 4)
    except Exception:
        return 48 * 1024 * 1024


# ---------------------------------------------------------------------------
# kernels
# ---------------------------------------------------------------------------
def _emb_ln_kernel(w_ref, t_ref, p_ref, g_ref, b_ref, o_ref, *, eps):
    # Fused embedding add + LayerNorm; output stored as bf16.
    x = w_ref[0] + t_ref[0] + p_ref[...]                    # (T, H) f32
    o_ref[0] = _layer_norm(x, g_ref[...], b_ref[...], eps).astype(o_ref.dtype)


def _bert_layer_kernel(x_ref, mask_ref,
                       wqkv_ref, bqkv_ref, wo_ref, bo_ref, g1_ref, be1_ref,
                       wi_ref, bi_ref, w2_ref, b2_ref, g2_ref, be2_ref,
                       o_ref, *, num_heads, head_dim, eps):
    xb = x_ref[0]                                  # (T, H) bf16 (MXU operand)
    x = xb.astype(F32)                             # residual / LN path in f32
    mask = mask_ref[0]                             # (1, T) additive attention mask
    T, H = x.shape

    # --- fused QKV: ONE full-width (T,H)@(H,3H) MXU matmul, f32 accumulation ---
    # (query columns of wqkv/bqkv are pre-scaled by 1/sqrt(head_dim) on the host)
    qkv = (jnp.dot(xb, wqkv_ref[...], preferred_element_type=F32)
           + bqkv_ref[...]).astype(BF16)           # (T, 3H)

    def split_heads(off):
        # (T, 3H) -> (nh, T, hd): static lane slices stacked along a new leading axis
        return jnp.stack(
            [qkv[:, off + h * head_dim: off + (h + 1) * head_dim]
             for h in range(num_heads)], axis=0)

    q = split_heads(0)                             # (nh, T, hd) bf16, pre-scaled
    k = split_heads(H)
    v = split_heads(2 * H)

    # --- head-batched attention: scores/softmax in f32, matmul inputs bf16 ---
    s = jnp.einsum('hqd,hkd->hqk', q, k, preferred_element_type=F32) + mask  # (nh,T,T)
    s = s - jnp.max(s, axis=-1, keepdims=True)
    p = jnp.exp(s)
    p = p * pl.reciprocal(jnp.sum(p, axis=-1, keepdims=True), approx=True)
    ctx = jnp.einsum('hqk,hkd->hqd', p.astype(BF16), v,
                     preferred_element_type=F32)                             # (nh,T,hd)

    # --- BertSelfOutput: merge heads along lanes, ONE (T,H)@(H,H) matmul, +res, LN ---
    ctx_b = ctx.astype(BF16)
    ctx_flat = jnp.concatenate([ctx_b[h] for h in range(num_heads)], axis=-1)  # (T, H)
    attn = jnp.dot(ctx_flat, wo_ref[...], preferred_element_type=F32) + bo_ref[...]
    h1 = _layer_norm(attn + x, g1_ref[...], be1_ref[...], eps)

    # --- BertIntermediate: dense + GELU (tanh, EUP) ---
    inter = _gelu_tanh(jnp.dot(h1.astype(BF16), wi_ref[...],
                               preferred_element_type=F32) + bi_ref[...])

    # --- BertOutput: dense + residual + LN; store bf16 ---
    out2 = jnp.dot(inter.astype(BF16), w2_ref[...],
                   preferred_element_type=F32) + b2_ref[...]
    o_ref[0] = _layer_norm(out2 + h1, g2_ref[...], be2_ref[...], eps).astype(o_ref.dtype)


def _pooler_kernel(x_ref, w_ref, b_ref, o_ref):
    y = jnp.dot(x_ref[...], w_ref[...], preferred_element_type=F32) + b_ref[...]
    o_ref[...] = jnp.tanh(y)


# ---------------------------------------------------------------------------
# wrappers (pallas_call plumbing)
# ---------------------------------------------------------------------------
def _const_spec(shape):
    # Constant-across-grid operand: single-buffer it (halves weight VMEM vs default
    # double buffering -- matters at BERT-base scale on v7x's 64 MiB VMEM).
    return pl.BlockSpec(shape, lambda b: (0,) * len(shape),
                        pipeline_mode=pl.Buffered(1))


def bert_embeddings(word_g, type_g, pos, gamma, beta, eps):
    B, T, H = word_g.shape
    return pl.pallas_call(
        functools.partial(_emb_ln_kernel, eps=eps),
        out_shape=jax.ShapeDtypeStruct((B, T, H), BF16),
        grid=(B,),
        in_specs=[pl.BlockSpec((1, T, H), lambda b: (b, 0, 0)),
                  pl.BlockSpec((1, T, H), lambda b: (b, 0, 0)),
                  _const_spec((T, H)),
                  _const_spec((1, H)),
                  _const_spec((1, H))],
        out_specs=pl.BlockSpec((1, T, H), lambda b: (b, 0, 0)),
        compiler_params=pltpu.CompilerParams(dimension_semantics=("parallel",)),
    )(word_g, type_g, pos, gamma, beta)


def bert_layer(x, ext_mask, p, num_heads, eps):
    B, T, H = x.shape
    inter = p["wi"].shape[1]
    head_dim = H // num_heads

    in_specs = [
        pl.BlockSpec((1, T, H), lambda b: (b, 0, 0)),        # hidden states (bf16)
        pl.BlockSpec((1, 1, T), lambda b: (b, 0, 0)),        # additive attn mask (f32)
        _const_spec((H, 3 * H)),                             # fused QKV weight (bf16)
        _const_spec((1, 3 * H)),                             # fused QKV bias (f32)
        _const_spec((H, H)), _const_spec((1, H)),            # self-output dense
        _const_spec((1, H)), _const_spec((1, H)),            # LayerNorm 1
        _const_spec((H, inter)), _const_spec((1, inter)),    # intermediate dense
        _const_spec((inter, H)), _const_spec((1, H)),        # output dense
        _const_spec((1, H)), _const_spec((1, H)),            # LayerNorm 2
    ]

    flops = 2 * B * T * (4 * H * H + 2 * T * H + 2 * H * inter)
    transcendentals = B * (num_heads * T * T + T * inter + num_heads * T + 4 * T)
    bytes_accessed = (2 * B * T * H * 2 + B * T * 4
                      + 2 * (4 * H * H + 2 * H * inter)
                      + 4 * (9 * H + inter))

    return pl.pallas_call(
        functools.partial(_bert_layer_kernel,
                          num_heads=num_heads, head_dim=head_dim, eps=eps),
        out_shape=jax.ShapeDtypeStruct((B, T, H), BF16),
        grid=(B,),
        in_specs=in_specs,
        out_specs=pl.BlockSpec((1, T, H), lambda b: (b, 0, 0)),
        compiler_params=pltpu.CompilerParams(
            dimension_semantics=("parallel",),
            vmem_limit_bytes=_vmem_limit_bytes()),
        cost_estimate=pl.CostEstimate(flops=int(flops),
                                      transcendentals=int(transcendentals),
                                      bytes_accessed=int(bytes_accessed)),
    )(x, ext_mask,
      p["wqkv"], p["bqkv"], p["wo"], p["bo"], p["g1"], p["b1"],
      p["wi"], p["bi"], p["w2"], p["b2"], p["g2"], p["b2b"])


def bert_pooler(hidden, w, b):
    B, T, H = hidden.shape
    first = hidden[:, 0, :]          # (B, H): only the first token enters the kernel
    return pl.pallas_call(
        _pooler_kernel,
        out_shape=jax.ShapeDtypeStruct((B, H), F32),
        grid=(1,),
        in_specs=[pl.BlockSpec((B, H), lambda i: (0, 0)),
                  pl.BlockSpec((H, H), lambda i: (0, 0)),
                  pl.BlockSpec((1, H), lambda i: (0, 0))],
        out_specs=pl.BlockSpec((B, H), lambda i: (0, 0)),
    )(first, w, b)


# ---------------------------------------------------------------------------
# parameter init / layout conversion + end-to-end model
# ---------------------------------------------------------------------------
def init_linear(key, in_dim, out_dim):
    k1, k2 = jax.random.split(key)
    w = jax.random.normal(k1, (in_dim, out_dim), F32) * 0.02   # (in, out) layout
    b = jax.random.normal(k2, (1, out_dim), F32) * 0.02
    return w, b


def prepare_layer_params(std, num_heads):
    """(in,out)-layout f32 params -> fused kernel layout (bf16 matmul weights)."""
    H = std["wq"].shape[0]
    hd = H // num_heads
    scale = 1.0 / float(hd) ** 0.5
    # Fold the 1/sqrt(head_dim) attention scale into the query projection (zero
    # in-kernel cost, numerically equivalent).
    wqkv = jnp.concatenate([std["wq"] * scale, std["wk"], std["wv"]], axis=1)  # (H, 3H)
    bqkv = jnp.concatenate([std["bq"] * scale, std["bk"], std["bv"]], axis=1)  # (1, 3H)
    return dict(
        wqkv=wqkv.astype(BF16), bqkv=bqkv.astype(F32),
        wo=std["wo"].astype(BF16), bo=std["bo"],
        g1=std["g1"], b1=std["b1"],
        wi=std["wi"].astype(BF16), bi=std["bi"],
        w2=std["w2"].astype(BF16), b2=std["b2"],
        g2=std["g2"], b2b=std["b2b"],
    )


def bert_forward(params, input_ids, attention_mask, token_type_ids, num_heads, eps):
    B, T = input_ids.shape
    # get_extended_attention_mask: (1 - mask) * -10000, broadcast over heads/queries
    ext_mask = ((1.0 - attention_mask.astype(F32)) * -10000.0)[:, None, :]   # (B, 1, T)

    # BertEmbeddings: gathers are glue (plain JAX); add + LayerNorm fused in one kernel.
    word_g = params["word_emb"][input_ids]
    type_g = params["type_emb"][token_type_ids]
    pos = params["pos_emb"][:T]
    hidden = bert_embeddings(word_g, type_g, pos,
                             params["emb_gamma"], params["emb_beta"], eps)
    # dropout(p=hidden_dropout_prob) is identity in eval mode.

    for layer_params in params["layers"]:
        hidden = bert_layer(hidden, ext_mask, layer_params, num_heads, eps)

    sequence_output = hidden.astype(F32)          # match the f32 interface of the module
    pooled = bert_pooler(hidden, params["pool_w"], params["pool_b"])
    return sequence_output, pooled


if __name__ == "__main__":
    # small config consistent with the module
    B, T = 2, 8
    VOCAB, H, NUM_HEADS, INTER, LAYERS = 50, 32, 4, 64, 2
    MAX_POS, TYPE_VOCAB, PAD_ID = 16, 2, 0
    EPS = 1e-12

    key = jax.random.PRNGKey(0)
    keys = iter(jax.random.split(key, 128))

    word_emb = jax.random.normal(next(keys), (VOCAB, H), F32) * 0.02
    word_emb = word_emb.at[PAD_ID].set(0.0)        # padding_idx row zeroed
    pos_emb = jax.random.normal(next(keys), (MAX_POS, H), F32) * 0.02
    type_emb = jax.random.normal(next(keys), (TYPE_VOCAB, H), F32) * 0.02

    layers = []
    for _ in range(LAYERS):
        std = {}
        std["wq"], std["bq"] = init_linear(next(keys), H, H)
        std["wk"], std["bk"] = init_linear(next(keys), H, H)
        std["wv"], std["bv"] = init_linear(next(keys), H, H)
        std["wo"], std["bo"] = init_linear(next(keys), H, H)
        std["g1"], std["b1"] = jnp.ones((1, H), F32), jnp.zeros((1, H), F32)
        std["wi"], std["bi"] = init_linear(next(keys), H, INTER)
        std["w2"], std["b2"] = init_linear(next(keys), INTER, H)
        std["g2"], std["b2b"] = jnp.ones((1, H), F32), jnp.zeros((1, H), F32)
        layers.append(prepare_layer_params(std, NUM_HEADS))

    pool_w, pool_b = init_linear(next(keys), H, H)

    params = dict(word_emb=word_emb, pos_emb=pos_emb, type_emb=type_emb,
                  emb_gamma=jnp.ones((1, H), F32), emb_beta=jnp.zeros((1, H), F32),
                  layers=layers, pool_w=pool_w.astype(BF16), pool_b=pool_b)

    input_ids = jax.random.randint(next(keys), (B, T), 0, VOCAB)
    attention_mask = jnp.ones((B, T), F32)
    token_type_ids = jnp.zeros((B, T), jnp.int32)

    forward = jax.jit(functools.partial(bert_forward, num_heads=NUM_HEADS, eps=EPS))
    sequence_output, pooled_output = forward(params, input_ids, attention_mask,
                                             token_type_ids)
    jax.block_until_ready((sequence_output, pooled_output))

    assert sequence_output.shape == (B, T, H)
    assert pooled_output.shape == (B, H)
    assert bool(jnp.all(jnp.isfinite(sequence_output)))
    assert bool(jnp.all(jnp.isfinite(pooled_output)))
    print("KERNEL_OK")
</pallas_src>

<mosaic_0001>
module attributes {stable_mosaic.version = 11 : i64} {
  func.func @_emb_ln_kernel(%arg0: i32, %arg1: memref<1x8x32xf32, #tpu.memory_space<vmem>>, %arg2: memref<1x8x32xf32, #tpu.memory_space<vmem>>, %arg3: memref<8x32xf32, #tpu.memory_space<vmem>>, %arg4: memref<1x32xf32, #tpu.memory_space<vmem>>, %arg5: memref<1x32xf32, #tpu.memory_space<vmem>>, %arg6: memref<1x8x32xbf16, #tpu.memory_space<vmem>>) attributes {dimension_semantics = [#tpu.dimension_semantics<parallel>], iteration_bounds = array<i64: 2>, scalar_prefetch = 0 : i64, scratch_operands = 0 : i64, tpu.core_type = #tpu.core_type<tc>, window_params = [{transform_indices = @transform_0, window_bounds = array<i64: 1, 8, 32>}, {transform_indices = @transform_1, window_bounds = array<i64: 1, 8, 32>}, {pipeline_mode = #tpu.pipeline_mode<synchronous>, transform_indices = @transform_2, window_bounds = array<i64: 8, 32>}, {pipeline_mode = #tpu.pipeline_mode<synchronous>, transform_indices = @transform_3, window_bounds = array<i64: 1, 32>}, {pipeline_mode = #tpu.pipeline_mode<synchronous>, transform_indices = @transform_4, window_bounds = array<i64: 1, 32>}, {transform_indices = @transform_5, window_bounds = array<i64: 1, 8, 32>}]} {
    %c0 = arith.constant 0 : index
    %c0_0 = arith.constant 0 : index
    %c0_1 = arith.constant 0 : index
    %0 = vector.load %arg1[%c0, %c0_0, %c0_1] : memref<1x8x32xf32, #tpu.memory_space<vmem>>, vector<1x8x32xf32>
    %1 = vector.shape_cast %0 : vector<1x8x32xf32> to vector<8x32xf32>
    %c0_2 = arith.constant 0 : index
    %c0_3 = arith.constant 0 : index
    %c0_4 = arith.constant 0 : index
    %2 = vector.load %arg2[%c0_2, %c0_3, %c0_4] : memref<1x8x32xf32, #tpu.memory_space<vmem>>, vector<1x8x32xf32>
    %3 = vector.shape_cast %2 : vector<1x8x32xf32> to vector<8x32xf32>
    %4 = arith.addf %1, %3 : vector<8x32xf32>
    %c0_5 = arith.constant 0 : index
    %c0_6 = arith.constant 0 : index
    %5 = vector.load %arg3[%c0_5, %c0_6] : memref<8x32xf32, #tpu.memory_space<vmem>>, vector<8x32xf32>
    %6 = arith.addf %4, %5 : vector<8x32xf32>
    %c0_7 = arith.constant 0 : index
    %c0_8 = arith.constant 0 : index
    %7 = vector.load %arg4[%c0_7, %c0_8] : memref<1x32xf32, #tpu.memory_space<vmem>>, vector<1x32xf32>
    %c0_9 = arith.constant 0 : index
    %c0_10 = arith.constant 0 : index
    %8 = vector.load %arg5[%c0_9, %c0_10] : memref<1x32xf32, #tpu.memory_space<vmem>>, vector<1x32xf32>
    %cst = arith.constant dense<0.000000e+00> : vector<8xf32>
    %9 = vector.multi_reduction <add>, %6, %cst [1] : vector<8x32xf32> to vector<8xf32>
    %10 = vector.shape_cast %9 : vector<8xf32> to vector<8x1xf32>
    %cst_11 = arith.constant 3.200000e+01 : f32
    %11 = vector.broadcast %cst_11 : f32 to vector<8x1xf32>
    %12 = arith.divf %10, %11 : vector<8x1xf32>
    %13 = arith.mulf %6, %6 : vector<8x32xf32>
    %cst_12 = arith.constant dense<0.000000e+00> : vector<8xf32>
    %14 = vector.multi_reduction <add>, %13, %cst_12 [1] : vector<8x32xf32> to vector<8xf32>
    %15 = vector.shape_cast %14 : vector<8xf32> to vector<8x1xf32>
    %cst_13 = arith.constant 3.200000e+01 : f32
    %16 = vector.broadcast %cst_13 : f32 to vector<8x1xf32>
    %17 = arith.divf %15, %16 : vector<8x1xf32>
    %18 = arith.mulf %12, %12 : vector<8x1xf32>
    %19 = arith.subf %17, %18 : vector<8x1xf32>
    %cst_14 = arith.constant 0.000000e+00 : f32
    %20 = vector.broadcast %cst_14 : f32 to vector<8x1xf32>
    %21 = arith.maximumf %19, %20 : vector<8x1xf32>
    %22 = vector.broadcast %12 : vector<8x1xf32> to vector<8x32xf32>
    %23 = arith.subf %6, %22 : vector<8x32xf32>
    %cst_15 = arith.constant 9.99999996E-13 : f32
    %24 = vector.broadcast %cst_15 : f32 to vector<8x1xf32>
    %25 = arith.addf %21, %24 : vector<8x1xf32>
    %26 = math.rsqrt %25 : vector<8x1xf32>
    %27 = vector.broadcast %26 : vector<8x1xf32> to vector<8x32xf32>
    %28 = arith.mulf %23, %27 : vector<8x32xf32>
    %29 = vector.broadcast %7 : vector<1x32xf32> to vector<8x32xf32>
    %30 = arith.mulf %28, %29 : vector<8x32xf32>
    %31 = vector.broadcast %8 : vector<1x32xf32> to vector<8x32xf32>
    %32 = arith.addf %30, %31 : vector<8x32xf32>
    %33 = arith.truncf %32 : vector<8x32xf32> to vector<8x32xbf16>
    %c0_16 = arith.constant 0 : index
    %c0_17 = arith.constant 0 : index
    %c0_18 = arith.constant 0 : index
    %34 = vector.load %arg6[%c0_16, %c0_17, %c0_18] : memref<1x8x32xbf16, #tpu.memory_space<vmem>>, vector<1x8x32xbf16>
    %35 = vector.shape_cast %34 : vector<1x8x32xbf16> to vector<8x32xbf16>
    %36 = vector.shape_cast %33 : vector<8x32xbf16> to vector<1x8x32xbf16>
    tpu.vector_store %arg6[%c0_16, %c0_17, %c0_18], %36 {strides = array<i32>} : memref<1x8x32xbf16, #tpu.memory_space<vmem>>, vector<1x8x32xbf16>,
    return
  }
  func.func @transform_0(%arg0: i32) -> (i32, i32, i32) {
    %c0_i32 = arith.constant 0 : i32
    %c0_i32_0 = arith.constant 0 : i32
    %c0_i32_1 = arith.constant 0 : i32
    return %arg0, %c0_i32, %c0_i32_0 : i32, i32, i32
  }
  func.func @transform_1(%arg0: i32) -> (i32, i32, i32) {
    %c0_i32 = arith.constant 0 : i32
    %c0_i32_0 = arith.constant 0 : i32
    %c0_i32_1 = arith.constant 0 : i32
    return %arg0, %c0_i32, %c0_i32_0 : i32, i32, i32
  }
  func.func @transform_2(%arg0: i32) -> (i32, i32) {
    %c0_i32 = arith.constant 0 : i32
    %c0_i32_0 = arith.constant 0 : i32
    %c0_i32_1 = arith.constant 0 : i32
    return %c0_i32, %c0_i32_0 : i32, i32
  }
  func.func @transform_3(%arg0: i32) -> (i32, i32) {
    %c0_i32 = arith.constant 0 : i32
    %c0_i32_0 = arith.constant 0 : i32
    %c0_i32_1 = arith.constant 0 : i32
    return %c0_i32, %c0_i32_0 : i32, i32
  }
  func.func @transform_4(%arg0: i32) -> (i32, i32) {
    %c0_i32 = arith.constant 0 : i32
    %c0_i32_0 = arith.constant 0 : i32
    %c0_i32_1 = arith.constant 0 : i32
    return %c0_i32, %c0_i32_0 : i32, i32
  }
  func.func @transform_5(%arg0: i32) -> (i32, i32, i32) {
    %c0_i32 = arith.constant 0 : i32
    %c0_i32_0 = arith.constant 0 : i32
    %c0_i32_1 = arith.constant 0 : i32
    return %arg0, %c0_i32, %c0_i32_0 : i32, i32, i32
  }
}

module attributes {stable_mosaic.version = 11 : i64} {
  func.func @_bert_layer_kernel(%arg0: i32, %arg1: memref<1x8x32xbf16, #tpu.memory_space<vmem>>, %arg2: memref<1x1x8xf32, #tpu.memory_space<vmem>>, %arg3: memref<32x96xbf16, #tpu.memory_space<vmem>>, %arg4: memref<1x96xf32, #tpu.memory_space<vmem>>, %arg5: memref<32x32xbf16, #tpu.memory_space<vmem>>, %arg6: memref<1x32xf32, #tpu.memory_space<vmem>>, %arg7: memref<1x32xf32, #tpu.memory_space<vmem>>, %arg8: memref<1x32xf32, #tpu.memory_space<vmem>>, %arg9: memref<32x64xbf16, #tpu.memory_space<vmem>>, %arg10: memref<1x64xf32, #tpu.memory_space<vmem>>, %arg11: memref<64x32xbf16, #tpu.memory_space<vmem>>, %arg12: memref<1x32xf32, #tpu.memory_space<vmem>>, %arg13: memref<1x32xf32, #tpu.memory_space<vmem>>, %arg14: memref<1x32xf32, #tpu.memory_space<vmem>>, %arg15: memref<1x8x32xbf16, #tpu.memory_space<vmem>>) attributes {dimension_semantics = [#tpu.dimension_semantics<parallel>], iteration_bounds = array<i64: 2>, scalar_prefetch = 0 : i64, scratch_operands = 0 : i64, tpu.core_type = #tpu.core_type<tc>, window_params = [{transform_indices = @transform_0, window_bounds = array<i64: 1, 8, 32>}, {transform_indices = @transform_1, window_bounds = array<i64: 1, 1, 8>}, {pipeline_mode = #tpu.pipeline_mode<synchronous>, transform_indices = @transform_2, window_bounds = array<i64: 32, 96>}, {pipeline_mode = #tpu.pipeline_mode<synchronous>, transform_indices = @transform_3, window_bounds = array<i64: 1, 96>}, {pipeline_mode = #tpu.pipeline_mode<synchronous>, transform_indices = @transform_4, window_bounds = array<i64: 32, 32>}, {pipeline_mode = #tpu.pipeline_mode<synchronous>, transform_indices = @transform_5, window_bounds = array<i64: 1, 32>}, {pipeline_mode = #tpu.pipeline_mode<synchronous>, transform_indices = @transform_6, window_bounds = array<i64: 1, 32>}, {pipeline_mode = #tpu.pipeline_mode<synchronous>, transform_indices = @transform_7, window_bounds = array<i64: 1, 32>}, {pipeline_mode = #tpu.pipeline_mode<synchronous>, transform_indices = @transform_8, window_bounds = array<i64: 32, 64>}, {pipeline_mode = #tpu.pipeline_mode<synchronous>, transform_indices = @transform_9, window_bounds = array<i64: 1, 64>}, {pipeline_mode = #tpu.pipeline_mode<synchronous>, transform_indices = @transform_10, window_bounds = array<i64: 64, 32>}, {pipeline_mode = #tpu.pipeline_mode<synchronous>, transform_indices = @transform_11, window_bounds = array<i64: 1, 32>}, {pipeline_mode = #tpu.pipeline_mode<synchronous>, transform_indices = @transform_12, window_bounds = array<i64: 1, 32>}, {pipeline_mode = #tpu.pipeline_mode<synchronous>, transform_indices = @transform_13, window_bounds = array<i64: 1, 32>}, {transform_indices = @transform_14, window_bounds = array<i64: 1, 8, 32>}]} {
    %c0 = arith.constant 0 : index
    %c0_0 = arith.constant 0 : index
    %c0_1 = arith.constant 0 : index
    %0 = vector.load %arg1[%c0, %c0_0, %c0_1] : memref<1x8x32xbf16, #tpu.memory_space<vmem>>, vector<1x8x32xbf16>
    %1 = vector.shape_cast %0 : vector<1x8x32xbf16> to vector<8x32xbf16>
    %2 = arith.extf %1 : vector<8x32xbf16> to vector<8x32xf32>
    %c0_2 = arith.constant 0 : index
    %c0_3 = arith.constant 0 : index
    %c0_4 = arith.constant 0 : index
    %3 = vector.load %arg2[%c0_2, %c0_3, %c0_4] : memref<1x1x8xf32, #tpu.memory_space<vmem>>, vector<1x1x8xf32>
    %4 = vector.shape_cast %3 : vector<1x1x8xf32> to vector<1x8xf32>
    %c0_5 = arith.constant 0 : index
    %c0_6 = arith.constant 0 : index
    %5 = vector.load %arg3[%c0_5, %c0_6] : memref<32x96xbf16, #tpu.memory_space<vmem>>, vector<32x96xbf16>
    %cst = arith.constant dense<0.000000e+00> : vector<8x96xf32>
    %6 = tpu.matmul %1, %5, %cst {dimension_numbers = #tpu.dot_dimension_numbers<[1], [0], [0], [1], [0, 0, 1, 1], [], []>} : vector<8x32xbf16>, vector<32x96xbf16>, vector<8x96xf32> -> vector<8x96xf32>
    %c0_7 = arith.constant 0 : index
    %c0_8 = arith.constant 0 : index
    %7 = vector.load %arg4[%c0_7, %c0_8] : memref<1x96xf32, #tpu.memory_space<vmem>>, vector<1x96xf32>
    %8 = vector.broadcast %7 : vector<1x96xf32> to vector<8x96xf32>
    %9 = arith.addf %6, %8 : vector<8x96xf32>
    %10 = arith.truncf %9 : vector<8x96xf32> to vector<8x96xbf16>
    %11 = vector.extract_strided_slice %10 {offsets = [0, 0], sizes = [8, 8], strides = [1, 1]} : vector<8x96xbf16> to vector<8x8xbf16>
    %12 = vector.extract_strided_slice %10 {offsets = [0, 8], sizes = [8, 8], strides = [1, 1]} : vector<8x96xbf16> to vector<8x8xbf16>
    %13 = vector.extract_strided_slice %10 {offsets = [0, 16], sizes = [8, 8], strides = [1, 1]} : vector<8x96xbf16> to vector<8x8xbf16>
    %14 = vector.extract_strided_slice %10 {offsets = [0, 24], sizes = [8, 8], strides = [1, 1]} : vector<8x96xbf16> to vector<8x8xbf16>
    %15 = vector.shape_cast %11 : vector<8x8xbf16> to vector<1x8x8xbf16>
    %16 = vector.shape_cast %12 : vector<8x8xbf16> to vector<1x8x8xbf16>
    %17 = vector.shape_cast %13 : vector<8x8xbf16> to vector<1x8x8xbf16>
    %18 = vector.shape_cast %14 : vector<8x8xbf16> to vector<1x8x8xbf16>
    %19 = tpu.concatenate %15, %16, %17, %18 in 0 : vector<1x8x8xbf16>, vector<1x8x8xbf16>, vector<1x8x8xbf16>, vector<1x8x8xbf16> -> vector<4x8x8xbf16>
    %20 = vector.extract_strided_slice %10 {offsets = [0, 32], sizes = [8, 8], strides = [1, 1]} : vector<8x96xbf16> to vector<8x8xbf16>
    %21 = vector.extract_strided_slice %10 {offsets = [0, 40], sizes = [8, 8], strides = [1, 1]} : vector<8x96xbf16> to vector<8x8xbf16>
    %22 = vector.extract_strided_slice %10 {offsets = [0, 48], sizes = [8, 8], strides = [1, 1]} : vector<8x96xbf16> to vector<8x8xbf16>
    %23 = vector.extract_strided_slice %10 {offsets = [0, 56], sizes = [8, 8], strides = [1, 1]} : vector<8x96xbf16> to vector<8x8xbf16>
    %24 = vector.shape_cast %20 : vector<8x8xbf16> to vector<1x8x8xbf16>
    %25 = vector.shape_cast %21 : vector<8x8xbf16> to vector<1x8x8xbf16>
    %26 = vector.shape_cast %22 : vector<8x8xbf16> to vector<1x8x8xbf16>
    %27 = vector.shape_cast %23 : vector<8x8xbf16> to vector<1x8x8xbf16>
    %28 = tpu.concatenate %24, %25, %26, %27 in 0 : vector<1x8x8xbf16>, vector<1x8x8xbf16>, vector<1x8x8xbf16>, vector<1x8x8xbf16> -> vector<4x8x8xbf16>
    %29 = vector.extract_strided_slice %10 {offsets = [0, 64], sizes = [8, 8], strides = [1, 1]} : vector<8x96xbf16> to vector<8x8xbf16>
    %30 = vector.extract_strided_slice %10 {offsets = [0, 72], sizes = [8, 8], strides = [1, 1]} : vector<8x96xbf16> to vector<8x8xbf16>
    %31 = vector.extract_strided_slice %10 {offsets = [0, 80], sizes = [8, 8], strides = [1, 1]} : vector<8x96xbf16> to vector<8x8xbf16>
    %32 = vector.extract_strided_slice %10 {offsets = [0, 88], sizes = [8, 8], strides = [1, 1]} : vector<8x96xbf16> to vector<8x8xbf16>
    %33 = vector.shape_cast %29 : vector<8x8xbf16> to vector<1x8x8xbf16>
    %34 = vector.shape_cast %30 : vector<8x8xbf16> to vector<1x8x8xbf16>
    %35 = vector.shape_cast %31 : vector<8x8xbf16> to vector<1x8x8xbf16>
    %36 = vector.shape_cast %32 : vector<8x8xbf16> to vector<1x8x8xbf16>
    %37 = tpu.concatenate %33, %34, %35, %36 in 0 : vector<1x8x8xbf16>, vector<1x8x8xbf16>, vector<1x8x8xbf16>, vector<1x8x8xbf16> -> vector<4x8x8xbf16>
    "tpu.trace_start"() <{level = 10 : i32, message = "hqd,hkd->hqk"}> : () -> ()
    %cst_9 = arith.constant dense<0.000000e+00> : vector<4x8x8xf32>
    %38 = tpu.matmul %19, %28, %cst_9 {dimension_numbers = #tpu.dot_dimension_numbers<[2], [2], [1], [1], [0, 0, 0, 1, 1, 1], [0], [0]>} : vector<4x8x8xbf16>, vector<4x8x8xbf16>, vector<4x8x8xf32> -> vector<4x8x8xf32>
    "tpu.trace_stop"() : () -> ()
    %39 = vector.shape_cast %4 : vector<1x8xf32> to vector<1x1x8xf32>
    %40 = vector.broadcast %39 : vector<1x1x8xf32> to vector<4x8x8xf32>
    %41 = arith.addf %38, %40 : vector<4x8x8xf32>
    %cst_10 = arith.constant dense<0xFF800000> : vector<4x8xf32>
    %42 = vector.multi_reduction <maximumf>, %41, %cst_10 [2] : vector<4x8x8xf32> to vector<4x8xf32>
    %43 = vector.shape_cast %42 : vector<4x8xf32> to vector<4x8x1xf32>
    %44 = vector.broadcast %43 : vector<4x8x1xf32> to vector<4x8x8xf32>
    %45 = arith.subf %41, %44 : vector<4x8x8xf32>
    %46 = math.exp %45 : vector<4x8x8xf32>
    %cst_11 = arith.constant dense<0.000000e+00> : vector<4x8xf32>
    %47 = vector.multi_reduction <add>, %46, %cst_11 [2] : vector<4x8x8xf32> to vector<4x8xf32>
    %48 = vector.shape_cast %47 : vector<4x8xf32> to vector<4x8x1xf32>
    %49 = tpu.reciprocal %48 {approx = true} : vector<4x8x1xf32> -> vector<4x8x1xf32>
    %50 = vector.broadcast %49 : vector<4x8x1xf32> to vector<4x8x8xf32>
    %51 = arith.mulf %46, %50 : vector<4x8x8xf32>
    %52 = arith.truncf %51 : vector<4x8x8xf32> to vector<4x8x8xbf16>
    "tpu.trace_start"() <{level = 10 : i32, message = "hqk,hkd->hqd"}> : () -> ()
    %cst_12 = arith.constant dense<0.000000e+00> : vector<4x8x8xf32>
    %53 = tpu.matmul %52, %37, %cst_12 {dimension_numbers = #tpu.dot_dimension_numbers<[2], [1], [1], [2], [0, 0, 0, 1, 1, 2], [0], [0]>} : vector<4x8x8xbf16>, vector<4x8x8xbf16>, vector<4x8x8xf32> -> vector<4x8x8xf32>
    "tpu.trace_stop"() : () -> ()
    %54 = arith.truncf %53 : vector<4x8x8xf32> to vector<4x8x8xbf16>
    %55 = vector.extract_strided_slice %54 {offsets = [0, 0, 0], sizes = [1, 8, 8], strides = [1, 1, 1]} : vector<4x8x8xbf16> to vector<1x8x8xbf16>
    %56 = vector.shape_cast %55 : vector<1x8x8xbf16> to vector<8x8xbf16>
    %57 = vector.extract_strided_slice %54 {offsets = [1, 0, 0], sizes = [1, 8, 8], strides = [1, 1, 1]} : vector<4x8x8xbf16> to vector<1x8x8xbf16>
    %58 = vector.shape_cast %57 : vector<1x8x8xbf16> to vector<8x8xbf16>
    %59 = vector.extract_strided_slice %54 {offsets = [2, 0, 0], sizes = [1, 8, 8], strides = [1, 1, 1]} : vector<4x8x8xbf16> to vector<1x8x8xbf16>
    %60 = vector.shape_cast %59 : vector<1x8x8xbf16> to vector<8x8xbf16>
    %61 = vector.extract_strided_slice %54 {offsets = [3, 0, 0], sizes = [1, 8, 8], strides = [1, 1, 1]} : vector<4x8x8xbf16> to vector<1x8x8xbf16>
    %62 = vector.shape_cast %61 : vector<1x8x8xbf16> to vector<8x8xbf16>
    %63 = tpu.concatenate %56, %58, %60, %62 in 1 : vector<8x8xbf16>, vector<8x8xbf16>, vector<8x8xbf16>, vector<8x8xbf16> -> vector<8x32xbf16>
    %c0_13 = arith.constant 0 : index
    %c0_14 = arith.constant 0 : index
    %64 = vector.load %arg5[%c0_13, %c0_14] : memref<32x32xbf16, #tpu.memory_space<vmem>>, vector<32x32xbf16>
    %cst_15 = arith.constant dense<0.000000e+00> : vector<8x32xf32>
    %65 = tpu.matmul %63, %64, %cst_15 {dimension_numbers = #tpu.dot_dimension_numbers<[1], [0], [0], [1], [0, 0, 1, 1], [], []>} : vector<8x32xbf16>, vector<32x32xbf16>, vector<8x32xf32> -> vector<8x32xf32>
    %c0_16 = arith.constant 0 : index
    %c0_17 = arith.constant 0 : index
    %66 = vector.load %arg6[%c0_16, %c0_17] : memref<1x32xf32, #tpu.memory_space<vmem>>, vector<1x32xf32>
    %67 = vector.broadcast %66 : vector<1x32xf32> to vector<8x32xf32>
    %68 = arith.addf %65, %67 : vector<8x32xf32>
    %69 = arith.addf %68, %2 : vector<8x32xf32>
    %c0_18 = arith.constant 0 : index
    %c0_19 = arith.constant 0 : index
    %70 = vector.load %arg7[%c0_18, %c0_19] : memref<1x32xf32, #tpu.memory_space<vmem>>, vector<1x32xf32>
    %c0_20 = arith.constant 0 : index
    %c0_21 = arith.constant 0 : index
    %71 = vector.load %arg8[%c0_20, %c0_21] : memref<1x32xf32, #tpu.memory_space<vmem>>, vector<1x32xf32>
    %cst_22 = arith.constant dense<0.000000e+00> : vector<8xf32>
    %72 = vector.multi_reduction <add>, %69, %cst_22 [1] : vector<8x32xf32> to vector<8xf32>
    %73 = vector.shape_cast %72 : vector<8xf32> to vector<8x1xf32>
    %cst_23 = arith.constant 3.200000e+01 : f32
    %74 = vector.broadcast %cst_23 : f32 to vector<8x1xf32>
    %75 = arith.divf %73, %74 : vector<8x1xf32>
    %76 = arith.mulf %69, %69 : vector<8x32xf32>
    %cst_24 = arith.constant dense<0.000000e+00> : vector<8xf32>
    %77 = vector.multi_reduction <add>, %76, %cst_24 [1] : vector<8x32xf32> to vector<8xf32>
    %78 = vector.shape_cast %77 : vector<8xf32> to vector<8x1xf32>
    %cst_25 = arith.constant 3.200000e+01 : f32
    %79 = vector.broadcast %cst_25 : f32 to vector<8x1xf32>
    %80 = arith.divf %78, %79 : vector<8x1xf32>
    %81 = arith.mulf %75, %75 : vector<8x1xf32>
    %82 = arith.subf %80, %81 : vector<8x1xf32>
    %cst_26 = arith.constant 0.000000e+00 : f32
    %83 = vector.broadcast %cst_26 : f32 to vector<8x1xf32>
    %84 = arith.maximumf %82, %83 : vector<8x1xf32>
    %85 = vector.broadcast %75 : vector<8x1xf32> to vector<8x32xf32>
    %86 = arith.subf %69, %85 : vector<8x32xf32>
    %cst_27 = arith.constant 9.99999996E-13 : f32
    %87 = vector.broadcast %cst_27 : f32 to vector<8x1xf32>
    %88 = arith.addf %84, %87 : vector<8x1xf32>
    %89 = math.rsqrt %88 : vector<8x1xf32>
    %90 = vector.broadcast %89 : vector<8x1xf32> to vector<8x32xf32>
    %91 = arith.mulf %86, %90 : vector<8x32xf32>
    %92 = vector.broadcast %70 : vector<1x32xf32> to vector<8x32xf32>
    %93 = arith.mulf %91, %92 : vector<8x32xf32>
    %94 = vector.broadcast %71 : vector<1x32xf32> to vector<8x32xf32>
    %95 = arith.addf %93, %94 : vector<8x32xf32>
    %96 = arith.truncf %95 : vector<8x32xf32> to vector<8x32xbf16>
    %c0_28 = arith.constant 0 : index
    %c0_29 = arith.constant 0 : index
    %97 = vector.load %arg9[%c0_28, %c0_29] : memref<32x64xbf16, #tpu.memory_space<vmem>>, vector<32x64xbf16>
    %cst_30 = arith.constant dense<0.000000e+00> : vector<8x64xf32>
    %98 = tpu.matmul %96, %97, %cst_30 {dimension_numbers = #tpu.dot_dimension_numbers<[1], [0], [0], [1], [0, 0, 1, 1], [], []>} : vector<8x32xbf16>, vector<32x64xbf16>, vector<8x64xf32> -> vector<8x64xf32>
    %c0_31 = arith.constant 0 : index
    %c0_32 = arith.constant 0 : index
    %99 = vector.load %arg10[%c0_31, %c0_32] : memref<1x64xf32, #tpu.memory_space<vmem>>, vector<1x64xf32>
    %100 = vector.broadcast %99 : vector<1x64xf32> to vector<8x64xf32>
    %101 = arith.addf %98, %100 : vector<8x64xf32>
    %cst_33 = arith.constant 5.000000e-01 : f32
    %102 = vector.broadcast %cst_33 : f32 to vector<8x64xf32>
    %103 = arith.mulf %102, %101 : vector<8x64xf32>
    %cst_34 = arith.constant 4.471500e-02 : f32
    %104 = vector.broadcast %cst_34 : f32 to vector<8x64xf32>
    %105 = arith.mulf %104, %101 : vector<8x64xf32>
    %106 = arith.mulf %105, %101 : vector<8x64xf32>
    %107 = arith.mulf %106, %101 : vector<8x64xf32>
    %108 = arith.addf %101, %107 : vector<8x64xf32>
    %cst_35 = arith.constant 0.797884583 : f32
    %109 = vector.broadcast %cst_35 : f32 to vector<8x64xf32>
    %110 = arith.mulf %109, %108 : vector<8x64xf32>
    %111 = math.tanh %110 : vector<8x64xf32>
    %cst_36 = arith.constant 1.000000e+00 : f32
    %112 = vector.broadcast %cst_36 : f32 to vector<8x64xf32>
    %113 = arith.addf %112, %111 : vector<8x64xf32>
    %114 = arith.mulf %103, %113 : vector<8x64xf32>
    %115 = arith.truncf %114 : vector<8x64xf32> to vector<8x64xbf16>
    %c0_37 = arith.constant 0 : index
    %c0_38 = arith.constant 0 : index
    %116 = vector.load %arg11[%c0_37, %c0_38] : memref<64x32xbf16, #tpu.memory_space<vmem>>, vector<64x32xbf16>
    %cst_39 = arith.constant dense<0.000000e+00> : vector<8x32xf32>
    %117 = tpu.matmul %115, %116, %cst_39 {dimension_numbers = #tpu.dot_dimension_numbers<[1], [0], [0], [1], [0, 0, 1, 1], [], []>} : vector<8x64xbf16>, vector<64x32xbf16>, vector<8x32xf32> -> vector<8x32xf32>
    %c0_40 = arith.constant 0 : index
    %c0_41 = arith.constant 0 : index
    %118 = vector.load %arg12[%c0_40, %c0_41] : memref<1x32xf32, #tpu.memory_space<vmem>>, vector<1x32xf32>
    %119 = vector.broadcast %118 : vector<1x32xf32> to vector<8x32xf32>
    %120 = arith.addf %117, %119 : vector<8x32xf32>
    %121 = arith.addf %120, %95 : vector<8x32xf32>
    %c0_42 = arith.constant 0 : index
    %c0_43 = arith.constant 0 : index
    %122 = vector.load %arg13[%c0_42, %c0_43] : memref<1x32xf32, #tpu.memory_space<vmem>>, vector<1x32xf32>
    %c0_44 = arith.constant 0 : index
    %c0_45 = arith.constant 0 : index
    %123 = vector.load %arg14[%c0_44, %c0_45] : memref<1x32xf32, #tpu.memory_space<vmem>>, vector<1x32xf32>
    %cst_46 = arith.constant dense<0.000000e+00> : vector<8xf32>
    %124 = vector.multi_reduction <add>, %121, %cst_46 [1] : vector<8x32xf32> to vector<8xf32>
    %125 = vector.shape_cast %124 : vector<8xf32> to vector<8x1xf32>
    %cst_47 = arith.constant 3.200000e+01 : f32
    %126 = vector.broadcast %cst_47 : f32 to vector<8x1xf32>
    %127 = arith.divf %125, %126 : vector<8x1xf32>
    %128 = arith.mulf %121, %121 : vector<8x32xf32>
    %cst_48 = arith.constant dense<0.000000e+00> : vector<8xf32>
    %129 = vector.multi_reduction <add>, %128, %cst_48 [1] : vector<8x32xf32> to vector<8xf32>
    %130 = vector.shape_cast %129 : vector<8xf32> to vector<8x1xf32>
    %cst_49 = arith.constant 3.200000e+01 : f32
    %131 = vector.broadcast %cst_49 : f32 to vector<8x1xf32>
    %132 = arith.divf %130, %131 : vector<8x1xf32>
    %133 = arith.mulf %127, %127 : vector<8x1xf32>
    %134 = arith.subf %132, %133 : vector<8x1xf32>
    %cst_50 = arith.constant 0.000000e+00 : f32
    %135 = vector.broadcast %cst_50 : f32 to vector<8x1xf32>
    %136 = arith.maximumf %134, %135 : vector<8x1xf32>
    %137 = vector.broadcast %127 : vector<8x1xf32> to vector<8x32xf32>
    %138 = arith.subf %121, %137 : vector<8x32xf32>
    %cst_51 = arith.constant 9.99999996E-13 : f32
    %139 = vector.broadcast %cst_51 : f32 to vector<8x1xf32>
    %140 = arith.addf %136, %139 : vector<8x1xf32>
    %141 = math.rsqrt %140 : vector<8x1xf32>
    %142 = vector.broadcast %141 : vector<8x1xf32> to vector<8x32xf32>
    %143 = arith.mulf %138, %142 : vector<8x32xf32>
    %144 = vector.broadcast %122 : vector<1x32xf32> to vector<8x32xf32>
    %145 = arith.mulf %143, %144 : vector<8x32xf32>
    %146 = vector.broadcast %123 : vector<1x32xf32> to vector<8x32xf32>
    %147 = arith.addf %145, %146 : vector<8x32xf32>
    %148 = arith.truncf %147 : vector<8x32xf32> to vector<8x32xbf16>
    %c0_52 = arith.constant 0 : index
    %c0_53 = arith.constant 0 : index
    %c0_54 = arith.constant 0 : index
    %149 = vector.load %arg15[%c0_52, %c0_53, %c0_54] : memref<1x8x32xbf16, #tpu.memory_space<vmem>>, vector<1x8x32xbf16>
    %150 = vector.shape_cast %149 : vector<1x8x32xbf16> to vector<8x32xbf16>
    %151 = vector.shape_cast %148 : vector<8x32xbf16> to vector<1x8x32xbf16>
    tpu.vector_store %arg15[%c0_52, %c0_53, %c0_54], %151 {strides = array<i32>} : memref<1x8x32xbf16, #tpu.memory_space<vmem>>, vector<1x8x32xbf16>,
    return
  }
  func.func @transform_0(%arg0: i32) -> (i32, i32, i32) {
    %c0_i32 = arith.constant 0 : i32
    %c0_i32_0 = arith.constant 0 : i32
    %c0_i32_1 = arith.constant 0 : i32
    return %arg0, %c0_i32, %c0_i32_0 : i32, i32, i32
  }
  func.func @transform_1(%arg0: i32) -> (i32, i32, i32) {
    %c0_i32 = arith.constant 0 : i32
    %c0_i32_0 = arith.constant 0 : i32
    %c0_i32_1 = arith.constant 0 : i32
    return %arg0, %c0_i32, %c0_i32_0 : i32, i32, i32
  }
  func.func @transform_2(%arg0: i32) -> (i32, i32) {
    %c0_i32 = arith.constant 0 : i32
    %c0_i32_0 = arith.constant 0 : i32
    %c0_i32_1 = arith.constant 0 : i32
    return %c0_i32, %c0_i32_0 : i32, i32
  }
  func.func @transform_3(%arg0: i32) -> (i32, i32) {
    %c0_i32 = arith.constant 0 : i32
    %c0_i32_0 = arith.constant 0 : i32
    %c0_i32_1 = arith.constant 0 : i32
    return %c0_i32, %c0_i32_0 : i32, i32
  }
  func.func @transform_4(%arg0: i32) -> (i32, i32) {
    %c0_i32 = arith.constant 0 : i32
    %c0_i32_0 = arith.constant 0 : i32
    %c0_i32_1 = arith.constant 0 : i32
    return %c0_i32, %c0_i32_0 : i32, i32
  }
  func.func @transform_5(%arg0: i32) -> (i32, i32) {
    %c0_i32 = arith.constant 0 : i32
    %c0_i32_0 = arith.constant 0 : i32
    %c0_i32_1 = arith.constant 0 : i32
    return %c0_i32, %c0_i32_0 : i32, i32
  }
  func.func @transform_6(%arg0: i32) -> (i32, i32) {
    %c0_i32 = arith.constant 0 : i32
    %c0_i32_0 = arith.constant 0 : i32
    %c0_i32_1 = arith.constant 0 : i32
    return %c0_i32, %c0_i32_0 : i32, i32
  }
  func.func @transform_7(%arg0: i32) -> (i32, i32) {
    %c0_i32 = arith.constant 0 : i32
    %c0_i32_0 = arith.constant 0 : i32
    %c0_i32_1 = arith.constant 0 : i32
    return %c0_i32, %c0_i32_0 : i32, i32
  }
  func.func @transform_8(%arg0: i32) -> (i32, i32) {
    %c0_i32 = arith.constant 0 : i32
    %c0_i32_0 = arith.constant 0 : i32
    %c0_i32_1 = arith.constant 0 : i32
    return %c0_i32, %c0_i32_0 : i32, i32
  }
  func.func @transform_9(%arg0: i32) -> (i32, i32) {
    %c0_i32 = arith.constant 0 : i32
    %c0_i32_0 = arith.constant 0 : i32
    %c0_i32_1 = arith.constant 0 : i32
    return %c0_i32, %c0_i32_0 : i32, i32
  }
  func.func @transform_10(%arg0: i32) -> (i32, i32) {
    %c0_i32 = arith.constant 0 : i32
    %c0_i32_0 = arith.constant 0 : i32
    %c0_i32_1 = arith.constant 0 : i32
    return %c0_i32, %c0_i32_0 : i32, i32
  }
  func.func @transform_11(%arg0: i32) -> (i32, i32) {
    %c0_i32 = arith.constant 0 : i32
    %c0_i32_0 = arith.constant 0 : i32
    %c0_i32_1 = arith.constant 0 : i32
    return %c0_i32, %c0_i32_0 : i32, i32
  }
  func.func @transform_12(%arg0: i32) -> (i32, i32) {
    %c0_i32 = arith.constant 0 : i32
    %c0_i32_0 = arith.constant 0 : i32
    %c0_i32_1 = arith.constant 0 : i32
    return %c0_i32, %c0_i32_0 : i32, i32
  }
  func.func @transform_13(%arg0: i32) -> (i32, i32) {
    %c0_i32 = arith.constant 0 : i32
    %c0_i32_0 = arith.constant 0 : i32
    %c0_i32_1 = arith.constant 0 : i32
    return %c0_i32, %c0_i32_0 : i32, i32
  }
  func.func @transform_14(%arg0: i32) -> (i32, i32, i32) {
    %c0_i32 = arith.constant 0 : i32
    %c0_i32_0 = arith.constant 0 : i32
    %c0_i32_1 = arith.constant 0 : i32
    return %arg0, %c0_i32, %c0_i32_0 : i32, i32, i32
  }
}

module attributes {stable_mosaic.version = 11 : i64} {
  func.func @_pooler_kernel(%arg0: i32, %arg1: memref<2x32xbf16, #tpu.memory_space<vmem>>, %arg2: memref<32x32xbf16, #tpu.memory_space<vmem>>, %arg3: memref<1x32xf32, #tpu.memory_space<vmem>>, %arg4: memref<2x32xf32, #tpu.memory_space<vmem>>) attributes {dimension_semantics = [#tpu.dimension_semantics<arbitrary>], iteration_bounds = array<i64: 1>, scalar_prefetch = 0 : i64, scratch_operands = 0 : i64, tpu.core_type = #tpu.core_type<tc>, window_params = [{pipeline_mode = #tpu.pipeline_mode<synchronous>, transform_indices = @transform_0, window_bounds = array<i64: 2, 32>}, {pipeline_mode = #tpu.pipeline_mode<synchronous>, transform_indices = @transform_1, window_bounds = array<i64: 32, 32>}, {pipeline_mode = #tpu.pipeline_mode<synchronous>, transform_indices = @transform_2, window_bounds = array<i64: 1, 32>}, {pipeline_mode = #tpu.pipeline_mode<synchronous>, transform_indices = @transform_3, window_bounds = array<i64: 2, 32>}]} {
    %c0 = arith.constant 0 : index
    %c0_0 = arith.constant 0 : index
    %0 = vector.load %arg1[%c0, %c0_0] : memref<2x32xbf16, #tpu.memory_space<vmem>>, vector<2x32xbf16>
    %c0_1 = arith.constant 0 : index
    %c0_2 = arith.constant 0 : index
    %1 = vector.load %arg2[%c0_1, %c0_2] : memref<32x32xbf16, #tpu.memory_space<vmem>>, vector<32x32xbf16>
    %cst = arith.constant dense<0.000000e+00> : vector<2x32xf32>
    %2 = tpu.matmul %0, %1, %cst {dimension_numbers = #tpu.dot_dimension_numbers<[1], [0], [0], [1], [0, 0, 1, 1], [], []>} : vector<2x32xbf16>, vector<32x32xbf16>, vector<2x32xf32> -> vector<2x32xf32>
    %c0_3 = arith.constant 0 : index
    %c0_4 = arith.constant 0 : index
    %3 = vector.load %arg3[%c0_3, %c0_4] : memref<1x32xf32, #tpu.memory_space<vmem>>, vector<1x32xf32>
    %4 = vector.broadcast %3 : vector<1x32xf32> to vector<2x32xf32>
    %5 = arith.addf %2, %4 : vector<2x32xf32>
    %6 = math.tanh %5 : vector<2x32xf32>
    %c0_5 = arith.constant 0 : index
    %c0_6 = arith.constant 0 : index
    %7 = vector.load %arg4[%c0_5, %c0_6] : memref<2x32xf32, #tpu.memory_space<vmem>>, vector<2x32xf32>
    tpu.vector_store %arg4[%c0_5, %c0_6], %6 {strides = array<i32>} : memref<2x32xf32, #tpu.memory_space<vmem>>, vector<2x32xf32>,
    return
  }
  func.func @transform_0(%arg0: i32) -> (i32, i32) {
    %c0_i32 = arith.constant 0 : i32
    %c0_i32_0 = arith.constant 0 : i32
    %c0_i32_1 = arith.constant 0 : i32
    return %c0_i32, %c0_i32_0 : i32, i32
  }
  func.func @transform_1(%arg0: i32) -> (i32, i32) {
    %c0_i32 = arith.constant 0 : i32
    %c0_i32_0 = arith.constant 0 : i32
    %c0_i32_1 = arith.constant 0 : i32
    return %c0_i32, %c0_i32_0 : i32, i32
  }
  func.func @transform_2(%arg0: i32) -> (i32, i32) {
    %c0_i32 = arith.constant 0 : i32
    %c0_i32_0 = arith.constant 0 : i32
    %c0_i32_1 = arith.constant 0 : i32
    return %c0_i32, %c0_i32_0 : i32, i32
  }
  func.func @transform_3(%arg0: i32) -> (i32, i32) {
    %c0_i32 = arith.constant 0 : i32
    %c0_i32_0 = arith.constant 0 : i32
    %c0_i32_1 = arith.constant 0 : i32
    return %c0_i32, %c0_i32_0 : i32, i32
  }
}

</mosaic_0001>

<llo_original>
// kernel: bert_forward.4
$region0: #{bert_forward.4}
  #allocation0 [shape = 'u32[]', space=smem, size = 0x4, offset = 0x4, fixed_abs, tag = 'smem constant byte address 0x4 - core index']
  #allocation1 [shape = 'u32[144,128]{1,0:T(1,128)}', space=vmem, size = 0x12000, scoped, tag = 'internal scratch']
  %s0 = inlined_call_operand.vmem [shape: f32[2,8,32], index: 0, kind: input, shape index: {}]
  %s1 = inlined_call_operand.vmem [shape: f32[2,8,32], index: 1, kind: input, shape index: {}]
  %s2 = inlined_call_operand.vmem [shape: f32[8,32], index: 2, kind: input, shape index: {}]
  %s3 = inlined_call_operand.vmem [shape: f32[1,32], index: 3, kind: input, shape index: {}]
  %s4 = inlined_call_operand.vmem [shape: f32[1,32], index: 4, kind: input, shape index: {}]
  %s5 = inlined_call_operand.vmem [shape: bf16[2,8,32], index: 5, kind: output, shape index: {}]
  %s6 = sld [smem:[#allocation0]]
  $region53: #{bert_forward.4} parent=0
    _
  %s8 = ssub.s32 1, %s6
  %s9 = scalar_select 0, %s8, %s6
  loop: start=0, step=1, limit=4
  $region2: #{bert_forward.4} parent=0 // loop_pre_header
    _
  $region3: #{bert_forward.4} parent=0 // loop_header
    %s11 = sphi 0, %s15
    %p12 = scmp.ge.s32.totalorder %s11, 4
    %s21 = sphi 0, %s23
    %s24 = sphi 0, %s21
    %s25 = sphi 0, %s24
    %s41 = sphi 0, %s25
    %s47 = sphi 0, %s49
    %s50 = sphi 0, %s47
    %s51 = sphi 0, %s50
    %s67 = sphi 0, %s51
    %s71 = sphi 0, %s71
    %s73 = sphi 0, %s71
    %s74 = sphi 0, %s73
    %s88 = sphi 0, %s74
    %s92 = sphi 0, %s92
    %s94 = sphi 0, %s92
    %s95 = sphi 0, %s94
    %s109 = sphi 0, %s95
    %s113 = sphi 0, %s113
    %s115 = sphi 0, %s113
    %s116 = sphi 0, %s115
    %s130 = sphi 0, %s116
    %s136 = sphi 0, %s138
    %s139 = sphi 0, %s136
    %s140 = sphi 0, %s139
    %s156 = sphi 0, %s140
  $region4: #{bert_forward.4} parent=0 // loop_header_branch
    %14 = sbr.rel (%p12) target = $region8
  $region5: #{bert_forward.4} parent=0 // loop_body
    %s16 = ssub.s32 %s11, 1
    %s17 = ssub.s32 %s11, 2
    %s18 = sadd.s32 %s11, 1
    %s19 = ssub.s32 %s11, %s18
    %p20 = scmp.eq.s32.totalorder %s19, 0
    %s22 = sadd.s32 %s21, 1
    %s23 = scalar_select %p20, %s21, %s22
    %p26 = pneg %p20
    %p27 = scmp.eq.s32.totalorder %s11, 1
    %p28 = por %p26, %p27
    %p29 = scmp.ne.s32.totalorder %s21, %s24
    %p30 = scmp.eq.s32.totalorder %s11, 0
    %p31 = por %p29, %p30
    %p32 = scmp.ne.s32.totalorder %s21, %s24
    %p33 = scmp.eq.s32.totalorder %s16, 1
    %p34 = por %p32, %p33
    %p35 = scmp.ne.s32.totalorder %s24, %s25
    %p36 = scmp.eq.s32.totalorder %s16, 0
    %p37 = por %p35, %p36
    %p38 = scmp.ne.s32.totalorder %s24, %s25
    %p39 = scmp.eq.s32.totalorder %s17, 1
    %p40 = por %p38, %p39
    %p42 = scmp.ne.s32.totalorder %s25, %s41
    %p43 = scmp.eq.s32.totalorder %s17, 0
    %p44 = por %p42, %p43
    %s45 = ssub.s32 %s11, %s18
    %p46 = scmp.eq.s32.totalorder %s45, 0
    %s48 = sadd.s32 %s47, 1
    %s49 = scalar_select %p46, %s47, %s48
    %p52 = pneg %p46
    %p53 = scmp.eq.s32.totalorder %s11, 1
    %p54 = por %p52, %p53
    %p55 = scmp.ne.s32.totalorder %s47, %s50
    %p56 = scmp.eq.s32.totalorder %s11, 0
    %p57 = por %p55, %p56
    %p58 = scmp.ne.s32.totalorder %s47, %s50
    %p59 = scmp.eq.s32.totalorder %s16, 1
    %p60 = por %p58, %p59
    %p61 = scmp.ne.s32.totalorder %s50, %s51
    %p62 = scmp.eq.s32.totalorder %s16, 0
    %p63 = por %p61, %p62
    %p64 = scmp.ne.s32.totalorder %s50, %s51
    %p65 = scmp.eq.s32.totalorder %s17, 1
    %p66 = por %p64, %p65
    %p68 = scmp.ne.s32.totalorder %s51, %s67
    %p69 = scmp.eq.s32.totalorder %s17, 0
    %p70 = por %p68, %p69
    %s72 = sadd.s32 %s71, 1
    %p75 = scmp.eq.s32.totalorder %s11, 1
    %p76 = scmp.ne.s32.totalorder %s71, %s73
    %p77 = scmp.eq.s32.totalorder %s11, 0
    %p78 = por %p76, %p77
    %p79 = scmp.ne.s32.totalorder %s71, %s73
    %p80 = scmp.eq.s32.totalorder %s16, 1
    %p81 = por %p79, %p80
    %p82 = scmp.ne.s32.totalorder %s73, %s74
    %p83 = scmp.eq.s32.totalorder %s16, 0
    %p84 = por %p82, %p83
    %p85 = scmp.ne.s32.totalorder %s73, %s74
    %p86 = scmp.eq.s32.totalorder %s17, 1
    %p87 = por %p85, %p86
    %p89 = scmp.ne.s32.totalorder %s74, %s88
    %p90 = scmp.eq.s32.totalorder %s17, 0
    %p91 = por %p89, %p90
    %s93 = sadd.s32 %s92, 1
    %p96 = scmp.eq.s32.totalorder %s11, 1
    %p97 = scmp.ne.s32.totalorder %s92, %s94
    %p98 = scmp.eq.s32.totalorder %s11, 0
    %p99 = por %p97, %p98
    %p100 = scmp.ne.s32.totalorder %s92, %s94
    %p101 = scmp.eq.s32.totalorder %s16, 1
    %p102 = por %p100, %p101
    %p103 = scmp.ne.s32.totalorder %s94, %s95
    %p104 = scmp.eq.s32.totalorder %s16, 0
    %p105 = por %p103, %p104
    %p106 = scmp.ne.s32.totalorder %s94, %s95
    %p107 = scmp.eq.s32.totalorder %s17, 1
    %p108 = por %p106, %p107
    %p110 = scmp.ne.s32.totalorder %s95, %s109
    %p111 = scmp.eq.s32.totalorder %s17, 0
    %p112 = por %p110, %p111
    %s114 = sadd.s32 %s113, 1
    %p117 = scmp.eq.s32.totalorder %s11, 1
    %p118 = scmp.ne.s32.totalorder %s113, %s115
    %p119 = scmp.eq.s32.totalorder %s11, 0
    %p120 = por %p118, %p119
    %p121 = scmp.ne.s32.totalorder %s113, %s115
    %p122 = scmp.eq.s32.totalorder %s16, 1
    %p123 = por %p121, %p122
    %p124 = scmp.ne.s32.totalorder %s115, %s116
    %p125 = scmp.eq.s32.totalorder %s16, 0
    %p126 = por %p124, %p125
    %p127 = scmp.ne.s32.totalorder %s115, %s116
    %p128 = scmp.eq.s32.totalorder %s17, 1
    %p129 = por %p127, %p128
    %p131 = scmp.ne.s32.totalorder %s116, %s130
    %p132 = scmp.eq.s32.totalorder %s17, 0
    %p133 = por %p131, %p132
    %s134 = ssub.s32 %s11, %s18
    %p135 = scmp.eq.s32.totalorder %s134, 0
    %s137 = sadd.s32 %s136, 1
    %s138 = scalar_select %p135, %s136, %s137
    %p141 = pneg %p135
    %p142 = scmp.eq.s32.totalorder %s11, 1
    %p143 = por %p141, %p142
    %p144 = scmp.ne.s32.totalorder %s136, %s139
    %p145 = scmp.eq.s32.totalorder %s11, 0
    %p146 = por %p144, %p145
    %p147 = scmp.ne.s32.totalorder %s136, %s139
    %p148 = scmp.eq.s32.totalorder %s16, 1
    %p149 = por %p147, %p148
    %p150 = scmp.ne.s32.totalorder %s139, %s140
    %p151 = scmp.eq.s32.totalorder %s16, 0
    %p152 = por %p150, %p151
    %p153 = scmp.ne.s32.totalorder %s139, %s140
    %p154 = scmp.eq.s32.totalorder %s17, 1
    %p155 = por %p153, %p154
    %p157 = scmp.ne.s32.totalorder %s140, %s156
    %p158 = scmp.eq.s32.totalorder %s17, 0
    %p159 = por %p157, %p158
    %p160 = scmp.le.s32.totalorder 1, %s11
    %p161 = scmp.lt.s32.totalorder %s11, 3
    %p162 = pnand %p160, %p161
    %p163 = pneg %p162
    // Predicated region
    $region9: #{bert_forward.4} parent=5 // pred_check
      _
    $region10: #{bert_forward.4} parent=5 // pred_check_branch
      %165 = sbr.rel (%p162) target = $region12
    $region11: #{bert_forward.4} parent=5 // pred_region
      %s166 = ssub.s32 %s11, 1
      // Predicated region
      $region13: #{bert_forward.4} parent=11 // pred_check
        %p167 = pneg %p84
      $region14: #{bert_forward.4} parent=11 // pred_check_branch
        %169 = sbr.rel (%p167) target = $region16
      $region15: #{bert_forward.4} parent=11 // pred_region
        _
      $region16: #{bert_forward.4} parent=11 // pred_fallthru
        _
      // Predicated region
      $region17: #{bert_forward.4} parent=11 // pred_check
        %p170 = pneg %p105
      $region18: #{bert_forward.4} parent=11 // pred_check_branch
        %172 = sbr.rel (%p170) target = $region20
      $region19: #{bert_forward.4} parent=11 // pred_region
        _
      $region20: #{bert_forward.4} parent=11 // pred_fallthru
        _
      // Predicated region
      $region21: #{bert_forward.4} parent=11 // pred_check
        %p173 = pneg %p126
      $region22: #{bert_forward.4} parent=11 // pred_check_branch
        %175 = sbr.rel (%p173) target = $region24
      $region23: #{bert_forward.4} parent=11 // pred_region
        _
      $region24: #{bert_forward.4} parent=11 // pred_fallthru
        _
    $region12: #{bert_forward.4} parent=5 // pred_fallthru
      _
    %p176 = scmp.lt.s32.totalorder %s11, 2
    // Predicated region
    $region25: #{bert_forward.4} parent=5 // pred_check
      %p177 = pneg %p176
    $region26: #{bert_forward.4} parent=5 // pred_check_branch
      %179 = sbr.rel (%p177) target = $region28
    $region27: #{bert_forward.4} parent=5 // pred_region
      // Predicated region
      $region29: #{bert_forward.4} parent=27 // pred_check
        %p180 = pneg %p31
      $region30: #{bert_forward.4} parent=27 // pred_check_branch
        %182 = sbr.rel (%p180) target = $region32
      $region31: #{bert_forward.4} parent=27 // pred_region
        %p183 = scmp.lt.s32.totalorder %s11, 1
        %s184 = scalar_select %p183, %s11, 1
        %s185 = smul.addr %s184, 8
        %s186 = scalar_lea.vmem %s0, %s185
      $region32: #{bert_forward.4} parent=27 // pred_fallthru
        _
      // Predicated region
      $region33: #{bert_forward.4} parent=27 // pred_check
        %p187 = pneg %p57
      $region34: #{bert_forward.4} parent=27 // pred_check_branch
        %189 = sbr.rel (%p187) target = $region36
      $region35: #{bert_forward.4} parent=27 // pred_region
        %p190 = scmp.lt.s32.totalorder %s11, 1
        %s191 = scalar_select %p190, %s11, 1
        %s192 = smul.addr %s191, 8
        %s193 = scalar_lea.vmem %s1, %s192
      $region36: #{bert_forward.4} parent=27 // pred_fallthru
        _
    $region28: #{bert_forward.4} parent=5 // pred_fallthru
      _
    %p194 = scmp.le.s32.totalorder 1, %s11
    %p195 = scmp.lt.s32.totalorder %s11, 3
    %p196 = pnand %p194, %p195
    %p197 = pneg %p196
    // Predicated region
    $region37: #{bert_forward.4} parent=5 // pred_check
      _
    $region38: #{bert_forward.4} parent=5 // pred_check_branch
      %199 = sbr.rel (%p196) target = $region40
    $region39: #{bert_forward.4} parent=5 // pred_region
      %s200 = ssub.s32 %s11, 1
      %p201 = scmp.lt.s32.totalorder %s16, 1
      %s202 = scalar_select %p201, %s16, 1
      %s203 = smul.addr %s202, 8
      %s204 = scalar_lea.vmem %s0, %s203
      %p205 = pneg %p37
      %p206 = pneg %p34
      %p207 = scmp.lt.s32.totalorder %s16, 1
      %s208 = scalar_select %p207, %s16, 1
      %s209 = smul.addr %s208, 8
      %s210 = scalar_lea.vmem %s1, %s209
      %p211 = pneg %p63
      %p212 = pneg %p60
      %p213 = pneg %p84
      %p214 = pneg %p81
      %p215 = pneg %p105
      %p216 = pneg %p102
      %p217 = pneg %p126
      %p218 = pneg %p123
      %p219 = pneg %p152
      %p220 = pneg %p149
      %p221 = scmp.lt.s32.totalorder %s16, 1
      %s222 = scalar_select %p221, %s16, 1
      %s223 = smul.addr %s222, 4
      %s224 = scalar_lea.vmem %s5, %s223
      %p225 = scmp.lt.s32.totalorder %s16, 1
      %s226 = scalar_select %p225, %s16, 1
      %s227 = smul.addr %s226, 8
      %s228 = scalar_lea.vmem %s0, %s227
      %p229 = scmp.lt.s32.totalorder %s16, 1
      %s230 = scalar_select %p229, %s16, 1
      %s231 = smul.addr %s230, 8
      %s232 = scalar_lea.vmem %s1, %s231
      %p233 = scmp.lt.s32.totalorder %s16, 1
      %s234 = scalar_select %p233, %s16, 1
      %s235 = smul.addr %s234, 4
      %s236 = scalar_lea.vmem %s5, %s235
      %v237 = vld [vmem:[%s228] sm:$0xff]
      %v238 = vld [vmem:[%s232] sm:$0xff]
      %v239 = vadd.f32 %v237, %v238
      %v240 = vld [vmem:[%s2] sm:$0xff]
      %v241 = vadd.f32 %v239, %v240
      %v242 = vld [vmem:[%s3] sm:$0x1]
      %v243 = vld [vmem:[%s4] sm:$0x1]
      %vm244 = vcmask 261120
      %v245 = vsel %vm244, %v241, 0.0
      %246 = vadd.xlane.f32.xlu0 %v245
      %v247 = vpop.xlane.xlu0 %246
      %v248 = vrcp.pop 32.0
      %v249 = vmul.f32 %v247, %v248
      %v250 = vmul.f32 %v241, %v241
      %v251 = vsel %vm244, %v250, 0.0
      %252 = vadd.xlane.f32.xlu0 %v251
      %v253 = vpop.xlane.xlu0 %252
      %v254 = vmul.f32 %v253, %v248
      %v255 = vmul.f32 %v249, %v249
      %v256 = vsub.f32 %v254, %v255
      %v257 = vmax.f32 %v256, 0.0
      %v258 = vsub.f32 %v241, %v249
      %v259 = vadd.f32 %v257, 1e-12
      %v260 = vrsqrt.pop %v259
      %v261 = vmul.f32 %v258, %v260
      %v263 = vlaneseq
      %v264 = vshrl.u32 %v263, 7
      %v265 = vsub.s32 0, %v264
      %v266 = vrot.slane %v242, %v265
      %v268 = vmul.f32 %v261, %v266
      %v270 = vlaneseq
      %v271 = vshrl.u32 %v270, 7
      %v272 = vsub.s32 0, %v271
      %v273 = vrot.slane %v243, %v272
      %v275 = vadd.f32 %v268, %v273
      %v276 = vpack.c.bf16 %v275, %v275
      %vm277 = vcmask 257024
      %278 = vst.msk [vmem:[%s236] sm:$0xf] %vm277, %v276
      %p279 = scmp.lt.s32.totalorder %s16, 1
      %s280 = scalar_select %p279, %s16, 1
      %s281 = smul.addr %s280, 4
      %s282 = scalar_lea.vmem %s5, %s281
      // Predicated region
      $region41: #{bert_forward.4} parent=39 // pred_check
        %p283 = pneg %p149
      $region42: #{bert_forward.4} parent=39 // pred_check_branch
        %285 = sbr.rel (%p283) target = $region44
      $region43: #{bert_forward.4} parent=39 // pred_region
        _
      $region44: #{bert_forward.4} parent=39 // pred_fallthru
        _
    $region40: #{bert_forward.4} parent=5 // pred_fallthru
      _
    %p286 = scmp.le.s32.totalorder 2, %s11
    // Predicated region
    $region45: #{bert_forward.4} parent=5 // pred_check
      %p287 = pneg %p286
    $region46: #{bert_forward.4} parent=5 // pred_check_branch
      %289 = sbr.rel (%p287) target = $region48
    $region47: #{bert_forward.4} parent=5 // pred_region
      %s290 = ssub.s32 %s11, 2
      // Predicated region
      $region49: #{bert_forward.4} parent=47 // pred_check
        %p291 = pneg %p155
      $region50: #{bert_forward.4} parent=47 // pred_check_branch
        %293 = sbr.rel (%p291) target = $region52
      $region51: #{bert_forward.4} parent=47 // pred_region
        %p294 = scmp.lt.s32.totalorder %s17, 1
        %s295 = scalar_select %p294, %s17, 1
        %s296 = smul.addr %s295, 4
        %s297 = scalar_lea.vmem %s5, %s296
      $region52: #{bert_forward.4} parent=47 // pred_fallthru
        _
    $region48: #{bert_forward.4} parent=5 // pred_fallthru
      _
  $region6: #{bert_forward.4} parent=0 // loop_footer
    %s15 = sadd.s32 1, %s11
  $region7: #{bert_forward.4} parent=0 // loop_footer_branch
    %10 = sbr.rel target = $region3
  $region8: #{bert_forward.4} parent=0 // loop_exit
    _

// kernel: bert_forward.7
$region0: #{bert_forward.7}
  #allocation0 [shape = 'u32[]', space=smem, size = 0x4, offset = 0x4, fixed_abs, tag = 'smem constant byte address 0x4 - core index']
  #allocation1 [shape = 'u32[144,128]{1,0:T(1,128)}', space=vmem, size = 0x12000, scoped, tag = 'internal scratch']
  %s0 = inlined_call_operand.vmem [shape: bf16[2,32], index: 0, kind: input, shape index: {}]
  %s1 = inlined_call_operand.vmem [shape: bf16[32,32], index: 1, kind: input, shape index: {}]
  %s2 = inlined_call_operand.vmem [shape: f32[1,32], index: 2, kind: input, shape index: {}]
  %s3 = inlined_call_operand.hbm [shape: f32[2,32], index: 3, kind: output, shape index: {}]
  %s4 = sld [smem:[#allocation0]]
  $region22: #{bert_forward.7} parent=0
    _
  %s6 = ssub.s32 1, %s4
  %s7 = scalar_select 0, %s6, %s4
  $region1: #{bert_forward.7} parent=0
    #allocation2 [shape = 'u8[1024]{0}', space=vmem, size = 0x400, scoped, tag = 'output window, operand 0, single buffered']
    #allocation3 [shape = 's32[1]{0}', space=sflag, size = 0x4, scoped, tag = 'scoped memory for bert_forward.7']
    %8 = vsyncpa [#allocation3], 0
    // Predicated region
    $region2: #{bert_forward.7} parent=1 // pred_check
      _
    $region3: #{bert_forward.7} parent=1 // pred_check_branch
      %10 = sbr.rel (0) target = $region5
    $region4: #{bert_forward.7} parent=1 // pred_region
      _
    $region5: #{bert_forward.7} parent=1 // pred_fallthru
      _
    // Predicated region
    $region6: #{bert_forward.7} parent=1 // pred_check
      _
    $region7: #{bert_forward.7} parent=1 // pred_check_branch
      %12 = sbr.rel (0) target = $region9
    $region8: #{bert_forward.7} parent=1 // pred_region
      _
    $region9: #{bert_forward.7} parent=1 // pred_fallthru
      _
    // Predicated region
    $region10: #{bert_forward.7} parent=1 // pred_check
      _
    $region11: #{bert_forward.7} parent=1 // pred_check_branch
      %14 = sbr.rel (0) target = $region13
    $region12: #{bert_forward.7} parent=1 // pred_region
      _
    $region13: #{bert_forward.7} parent=1 // pred_fallthru
      _
    %v16 = vld [vmem:[%s0] sm:$0x1]
    %v17 = vld [vmem:[%s1] sm:$0xf]
    %v18 = vld [vmem:[%s1 + $0x4] sm:$0xf]
    %v19 = vld [vmem:[%s1 + $0x8] sm:$0xf]
    %v20 = vld [vmem:[%s1 + $0xc] sm:$0xf]
    %v21 = vld [vmem:[%s2] sm:$0x1]
    %v23 = vlaneseq
    %v24 = vshrl.u32 %v23, 7
    %v25 = vsub.s32 0, %v24
    %v26 = vrot.slane %v21, %v25
    %v32 = vunpack.c.l.b16 %v17
    %v33 = vunpack.c.l.b16 %v18
    %v34 = vunpack.c.l.b16 %v19
    %v35 = vunpack.c.l.b16 %v20
    %v36 = vpack.c.b16 %v33, %v32
    %v37 = vpack.c.b16 %v35, %v34
    %vm40 = vcmask 261120
    %v42 = vsel %vm40, %v16, 0
    %44 = vmatprep.subr.bf16.mxu0 0
    %45 = vmatpush1.bf16.msra.mxu0 %v36
    %46 = vmatprep.subr.bf16.mxu0 0
    %47 = vmatpush1.bf16.msra.mxu0 %v37
    %48 = vmatprep.subr.bf16.mxu0 0
    %49 = vmatpush1.bf16.msra.mxu0 0
    %50 = vmatprep.subr.bf16.mxu0 0
    %51 = vmatpush1.bf16.msra.mxu0 0
    %52 = vmatprep.subr.bf16.mxu0 0
    %53 = vmatpush1.bf16.msra.mxu0 0
    %54 = vmatprep.subr.bf16.mxu0 0
    %55 = vmatpush1.bf16.msra.mxu0 0
    %56 = vmatprep.subr.bf16.mxu0 0
    %57 = vmatpush1.bf16.msra.mxu0 0
    %58 = vmatprep.subr.bf16.mxu0 0
    %59 = vmatpush1.bf16.msra.mxu0 0
    %60 = vmatprep.subr.bf16.mxu0 0
    %61 = vmatpush1.bf16.msra.mxu0 0
    %62 = vmatprep.subr.bf16.mxu0 0
    %63 = vmatpush1.bf16.msra.mxu0 0
    %64 = vmatprep.subr.bf16.mxu0 0
    %65 = vmatpush1.bf16.msra.mxu0 0
    %66 = vmatprep.subr.bf16.mxu0 0
    %67 = vmatpush1.bf16.msra.mxu0 0
    %68 = vmatprep.subr.bf16.mxu0 0
    %69 = vmatpush1.bf16.msra.mxu0 0
    %70 = vmatprep.subr.bf16.mxu0 0
    %71 = vmatpush1.bf16.msra.mxu0 0
    %72 = vmatprep.subr.bf16.mxu0 0
    %73 = vmatpush1.bf16.msra.mxu0 0
    %74 = vmatprep.subr.bf16.mxu0 0
    %75 = vmatpush1.bf16.msra.mxu0 0
    %76 = vmatprep.mubr.bf16.mxu0 0
    %77 = vmatmul.mubr.bf16.gmra.mrb[0].mxu0 %v42
    %v78 = vpop.f32.mrb[0].mxu0
    %v79 = vadd.f32 %v26, %v78
    %v80 = vpop.f32.mrb[0].mxu0
    %v81 = vpop.f32.mrb[0].mxu0
    %v82 = vpop.f32.mrb[0].mxu0
    %83 = vdwg.mxu0
    %v84 = vtanh.pop %v79
    %vm85 = vcmask 254976
    %86 = vst.msk [vmem:[#allocation2] sm:$0x3] %vm85, %v84
    // Predicated region
    $region14: #{bert_forward.7} parent=1 // pred_check
      _
    $region15: #{bert_forward.7} parent=1 // pred_check_branch
      %88 = sbr.rel (0) target = $region17
    $region16: #{bert_forward.7} parent=1 // pred_region
      %s90 = ssub.s32 32, 32
      %91 = vsyncadd [#allocation3], %s90
      %s93 = sshll.u32 [#allocation2], 4
      %s94 = int_to_ptr.vmem [resolvable:$true] %s93
      %96 = dma.vmem_to_hbm [thread:$0]  %s94, 32, %s3, [#allocation3]
    $region17: #{bert_forward.7} parent=1 // pred_fallthru
      _
    // Predicated region
    $region18: #{bert_forward.7} parent=1 // pred_check
      _
    $region19: #{bert_forward.7} parent=1 // pred_check_branch
      %98 = sbr.rel (0) target = $region21
    $region20: #{bert_forward.7} parent=1 // pred_region
      %99 = dma.done [#allocation3], 32
    $region21: #{bert_forward.7} parent=1 // pred_fallthru
      _
    %100 = vsyncpa [#allocation3], 1

// kernel: bert_forward.5
$region0: #{bert_forward.5}
  #allocation0 [shape = 'u32[]', space=smem, size = 0x4, offset = 0x4, fixed_abs, tag = 'smem constant byte address 0x4 - core index']
  #allocation1 [shape = 'u32[144,128]{1,0:T(1,128)}', space=vmem, size = 0x12000, scoped, tag = 'internal scratch']
  %s0 = inlined_call_operand.vmem [shape: bf16[2,8,32], index: 0, kind: input, shape index: {}]
  %s1 = inlined_call_operand.vmem [shape: f32[2,1,8], index: 1, kind: input, shape index: {}]
  %s2 = inlined_call_operand.vmem [shape: bf16[32,96], index: 2, kind: input, shape index: {}]
  %s3 = inlined_call_operand.vmem [shape: f32[1,96], index: 3, kind: input, shape index: {}]
  %s4 = inlined_call_operand.vmem [shape: bf16[32,32], index: 4, kind: input, shape index: {}]
  %s5 = inlined_call_operand.vmem [shape: f32[1,32], index: 5, kind: input, shape index: {}]
  %s6 = inlined_call_operand.vmem [shape: f32[1,32], index: 6, kind: input, shape index: {}]
  %s7 = inlined_call_operand.vmem [shape: f32[1,32], index: 7, kind: input, shape index: {}]
  %s8 = inlined_call_operand.vmem [shape: bf16[32,64], index: 8, kind: input, shape index: {}]
  %s9 = inlined_call_operand.vmem [shape: f32[1,64], index: 9, kind: input, shape index: {}]
  %s10 = inlined_call_operand.vmem [shape: bf16[64,32], index: 10, kind: input, shape index: {}]
  %s11 = inlined_call_operand.vmem [shape: f32[1,32], index: 11, kind: input, shape index: {}]
  %s12 = inlined_call_operand.vmem [shape: f32[1,32], index: 12, kind: input, shape index: {}]
  %s13 = inlined_call_operand.vmem [shape: f32[1,32], index: 13, kind: input, shape index: {}]
  %s14 = inlined_call_operand.vmem [shape: bf16[2,8,32], index: 14, kind: output, shape index: {}]
  %s15 = sld [smem:[#allocation0]]
  $region89: #{bert_forward.5} parent=0
    _
  %s17 = ssub.s32 1, %s15
  %s18 = scalar_select 0, %s17, %s15
  loop: start=0, step=1, limit=4
  $region2: #{bert_forward.5} parent=0 // loop_pre_header
    _
  $region3: #{bert_forward.5} parent=0 // loop_header
    %s20 = sphi 0, %s24
    %p21 = scmp.ge.s32.totalorder %s20, 4
    %s30 = sphi 0, %s32
    %s33 = sphi 0, %s30
    %s34 = sphi 0, %s33
    %s50 = sphi 0, %s34
    %s56 = sphi 0, %s58
    %s59 = sphi 0, %s56
    %s60 = sphi 0, %s59
    %s76 = sphi 0, %s60
    %s80 = sphi 0, %s80
    %s82 = sphi 0, %s80
    %s83 = sphi 0, %s82
    %s97 = sphi 0, %s83
    %s101 = sphi 0, %s101
    %s103 = sphi 0, %s101
    %s104 = sphi 0, %s103
    %s118 = sphi 0, %s104
    %s122 = sphi 0, %s122
    %s124 = sphi 0, %s122
    %s125 = sphi 0, %s124
    %s139 = sphi 0, %s125
    %s143 = sphi 0, %s143
    %s145 = sphi 0, %s143
    %s146 = sphi 0, %s145
    %s160 = sphi 0, %s146
    %s164 = sphi 0, %s164
    %s166 = sphi 0, %s164
    %s167 = sphi 0, %s166
    %s181 = sphi 0, %s167
    %s185 = sphi 0, %s185
    %s187 = sphi 0, %s185
    %s188 = sphi 0, %s187
    %s202 = sphi 0, %s188
    %s206 = sphi 0, %s206
    %s208 = sphi 0, %s206
    %s209 = sphi 0, %s208
    %s223 = sphi 0, %s209
    %s227 = sphi 0, %s227
    %s229 = sphi 0, %s227
    %s230 = sphi 0, %s229
    %s244 = sphi 0, %s230
    %s248 = sphi 0, %s248
    %s250 = sphi 0, %s248
    %s251 = sphi 0, %s250
    %s265 = sphi 0, %s251
    %s269 = sphi 0, %s269
    %s271 = sphi 0, %s269
    %s272 = sphi 0, %s271
    %s286 = sphi 0, %s272
    %s290 = sphi 0, %s290
    %s292 = sphi 0, %s290
    %s293 = sphi 0, %s292
    %s307 = sphi 0, %s293
    %s311 = sphi 0, %s311
    %s313 = sphi 0, %s311
    %s314 = sphi 0, %s313
    %s328 = sphi 0, %s314
    %s334 = sphi 0, %s336
    %s337 = sphi 0, %s334
    %s338 = sphi 0, %s337
    %s354 = sphi 0, %s338
  $region4: #{bert_forward.5} parent=0 // loop_header_branch
    %23 = sbr.rel (%p21) target = $region8
  $region5: #{bert_forward.5} parent=0 // loop_body
    %s25 = ssub.s32 %s20, 1
    %s26 = ssub.s32 %s20, 2
    %s27 = sadd.s32 %s20, 1
    %s28 = ssub.s32 %s20, %s27
    %p29 = scmp.eq.s32.totalorder %s28, 0
    %s31 = sadd.s32 %s30, 1
    %s32 = scalar_select %p29, %s30, %s31
    %p35 = pneg %p29
    %p36 = scmp.eq.s32.totalorder %s20, 1
    %p37 = por %p35, %p36
    %p38 = scmp.ne.s32.totalorder %s30, %s33
    %p39 = scmp.eq.s32.totalorder %s20, 0
    %p40 = por %p38, %p39
    %p41 = scmp.ne.s32.totalorder %s30, %s33
    %p42 = scmp.eq.s32.totalorder %s25, 1
    %p43 = por %p41, %p42
    %p44 = scmp.ne.s32.totalorder %s33, %s34
    %p45 = scmp.eq.s32.totalorder %s25, 0
    %p46 = por %p44, %p45
    %p47 = scmp.ne.s32.totalorder %s33, %s34
    %p48 = scmp.eq.s32.totalorder %s26, 1
    %p49 = por %p47, %p48
    %p51 = scmp.ne.s32.totalorder %s34, %s50
    %p52 = scmp.eq.s32.totalorder %s26, 0
    %p53 = por %p51, %p52
    %s54 = ssub.s32 %s20, %s27
    %p55 = scmp.eq.s32.totalorder %s54, 0
    %s57 = sadd.s32 %s56, 1
    %s58 = scalar_select %p55, %s56, %s57
    %p61 = pneg %p55
    %p62 = scmp.eq.s32.totalorder %s20, 1
    %p63 = por %p61, %p62
    %p64 = scmp.ne.s32.totalorder %s56, %s59
    %p65 = scmp.eq.s32.totalorder %s20, 0
    %p66 = por %p64, %p65
    %p67 = scmp.ne.s32.totalorder %s56, %s59
    %p68 = scmp.eq.s32.totalorder %s25, 1
    %p69 = por %p67, %p68
    %p70 = scmp.ne.s32.totalorder %s59, %s60
    %p71 = scmp.eq.s32.totalorder %s25, 0
    %p72 = por %p70, %p71
    %p73 = scmp.ne.s32.totalorder %s59, %s60
    %p74 = scmp.eq.s32.totalorder %s26, 1
    %p75 = por %p73, %p74
    %p77 = scmp.ne.s32.totalorder %s60, %s76
    %p78 = scmp.eq.s32.totalorder %s26, 0
    %p79 = por %p77, %p78
    %s81 = sadd.s32 %s80, 1
    %p84 = scmp.eq.s32.totalorder %s20, 1
    %p85 = scmp.ne.s32.totalorder %s80, %s82
    %p86 = scmp.eq.s32.totalorder %s20, 0
    %p87 = por %p85, %p86
    %p88 = scmp.ne.s32.totalorder %s80, %s82
    %p89 = scmp.eq.s32.totalorder %s25, 1
    %p90 = por %p88, %p89
    %p91 = scmp.ne.s32.totalorder %s82, %s83
    %p92 = scmp.eq.s32.totalorder %s25, 0
    %p93 = por %p91, %p92
    %p94 = scmp.ne.s32.totalorder %s82, %s83
    %p95 = scmp.eq.s32.totalorder %s26, 1
    %p96 = por %p94, %p95
    %p98 = scmp.ne.s32.totalorder %s83, %s97
    %p99 = scmp.eq.s32.totalorder %s26, 0
    %p100 = por %p98, %p99
    %s102 = sadd.s32 %s101, 1
    %p105 = scmp.eq.s32.totalorder %s20, 1
    %p106 = scmp.ne.s32.totalorder %s101, %s103
    %p107 = scmp.eq.s32.totalorder %s20, 0
    %p108 = por %p106, %p107
    %p109 = scmp.ne.s32.totalorder %s101, %s103
    %p110 = scmp.eq.s32.totalorder %s25, 1
    %p111 = por %p109, %p110
    %p112 = scmp.ne.s32.totalorder %s103, %s104
    %p113 = scmp.eq.s32.totalorder %s25, 0
    %p114 = por %p112, %p113
    %p115 = scmp.ne.s32.totalorder %s103, %s104
    %p116 = scmp.eq.s32.totalorder %s26, 1
    %p117 = por %p115, %p116
    %p119 = scmp.ne.s32.totalorder %s104, %s118
    %p120 = scmp.eq.s32.totalorder %s26, 0
    %p121 = por %p119, %p120
    %s123 = sadd.s32 %s122, 1
    %p126 = scmp.eq.s32.totalorder %s20, 1
    %p127 = scmp.ne.s32.totalorder %s122, %s124
    %p128 = scmp.eq.s32.totalorder %s20, 0
    %p129 = por %p127, %p128
    %p130 = scmp.ne.s32.totalorder %s122, %s124
    %p131 = scmp.eq.s32.totalorder %s25, 1
    %p132 = por %p130, %p131
    %p133 = scmp.ne.s32.totalorder %s124, %s125
    %p134 = scmp.eq.s32.totalorder %s25, 0
    %p135 = por %p133, %p134
    %p136 = scmp.ne.s32.totalorder %s124, %s125
    %p137 = scmp.eq.s32.totalorder %s26, 1
    %p138 = por %p136, %p137
    %p140 = scmp.ne.s32.totalorder %s125, %s139
    %p141 = scmp.eq.s32.totalorder %s26, 0
    %p142 = por %p140, %p141
    %s144 = sadd.s32 %s143, 1
    %p147 = scmp.eq.s32.totalorder %s20, 1
    %p148 = scmp.ne.s32.totalorder %s143, %s145
    %p149 = scmp.eq.s32.totalorder %s20, 0
    %p150 = por %p148, %p149
    %p151 = scmp.ne.s32.totalorder %s143, %s145
    %p152 = scmp.eq.s32.totalorder %s25, 1
    %p153 = por %p151, %p152
    %p154 = scmp.ne.s32.totalorder %s145, %s146
    %p155 = scmp.eq.s32.totalorder %s25, 0
    %p156 = por %p154, %p155
    %p157 = scmp.ne.s32.totalorder %s145, %s146
    %p158 = scmp.eq.s32.totalorder %s26, 1
    %p159 = por %p157, %p158
    %p161 = scmp.ne.s32.totalorder %s146, %s160
    %p162 = scmp.eq.s32.totalorder %s26, 0
    %p163 = por %p161, %p162
    %s165 = sadd.s32 %s164, 1
    %p168 = scmp.eq.s32.totalorder %s20, 1
    %p169 = scmp.ne.s32.totalorder %s164, %s166
    %p170 = scmp.eq.s32.totalorder %s20, 0
    %p171 = por %p169, %p170
    %p172 = scmp.ne.s32.totalorder %s164, %s166
    %p173 = scmp.eq.s32.totalorder %s25, 1
    %p174 = por %p172, %p173
    %p175 = scmp.ne.s32.totalorder %s166, %s167
    %p176 = scmp.eq.s32.totalorder %s25, 0
    %p177 = por %p175, %p176
    %p178 = scmp.ne.s32.totalorder %s166, %s167
    %p179 = scmp.eq.s32.totalorder %s26, 1
    %p180 = por %p178, %p179
    %p182 = scmp.ne.s32.totalorder %s167, %s181
    %p183 = scmp.eq.s32.totalorder %s26, 0
    %p184 = por %p182, %p183
    %s186 = sadd.s32 %s185, 1
    %p189 = scmp.eq.s32.totalorder %s20, 1
    %p190 = scmp.ne.s32.totalorder %s185, %s187
    %p191 = scmp.eq.s32.totalorder %s20, 0
    %p192 = por %p190, %p191
    %p193 = scmp.ne.s32.totalorder %s185, %s187
    %p194 = scmp.eq.s32.totalorder %s25, 1
    %p195 = por %p193, %p194
    %p196 = scmp.ne.s32.totalorder %s187, %s188
    %p197 = scmp.eq.s32.totalorder %s25, 0
    %p198 = por %p196, %p197
    %p199 = scmp.ne.s32.totalorder %s187, %s188
    %p200 = scmp.eq.s32.totalorder %s26, 1
    %p201 = por %p199, %p200
    %p203 = scmp.ne.s32.totalorder %s188, %s202
    %p204 = scmp.eq.s32.totalorder %s26, 0
    %p205 = por %p203, %p204
    %s207 = sadd.s32 %s206, 1
    %p210 = scmp.eq.s32.totalorder %s20, 1
    %p211 = scmp.ne.s32.totalorder %s206, %s208
    %p212 = scmp.eq.s32.totalorder %s20, 0
    %p213 = por %p211, %p212
    %p214 = scmp.ne.s32.totalorder %s206, %s208
    %p215 = scmp.eq.s32.totalorder %s25, 1
    %p216 = por %p214, %p215
    %p217 = scmp.ne.s32.totalorder %s208, %s209
    %p218 = scmp.eq.s32.totalorder %s25, 0
    %p219 = por %p217, %p218
    %p220 = scmp.ne.s32.totalorder %s208, %s209
    %p221 = scmp.eq.s32.totalorder %s26, 1
    %p222 = por %p220, %p221
    %p224 = scmp.ne.s32.totalorder %s209, %s223
    %p225 = scmp.eq.s32.totalorder %s26, 0
    %p226 = por %p224, %p225
    %s228 = sadd.s32 %s227, 1
    %p231 = scmp.eq.s32.totalorder %s20, 1
    %p232 = scmp.ne.s32.totalorder %s227, %s229
    %p233 = scmp.eq.s32.totalorder %s20, 0
    %p234 = por %p232, %p233
    %p235 = scmp.ne.s32.totalorder %s227, %s229
    %p236 = scmp.eq.s32.totalorder %s25, 1
    %p237 = por %p235, %p236
    %p238 = scmp.ne.s32.totalorder %s229, %s230
    %p239 = scmp.eq.s32.totalorder %s25, 0
    %p240 = por %p238, %p239
    %p241 = scmp.ne.s32.totalorder %s229, %s230
    %p242 = scmp.eq.s32.totalorder %s26, 1
    %p243 = por %p241, %p242
    %p245 = scmp.ne.s32.totalorder %s230, %s244
    %p246 = scmp.eq.s32.totalorder %s26, 0
    %p247 = por %p245, %p246
    %s249 = sadd.s32 %s248, 1
    %p252 = scmp.eq.s32.totalorder %s20, 1
    %p253 = scmp.ne.s32.totalorder %s248, %s250
    %p254 = scmp.eq.s32.totalorder %s20, 0
    %p255 = por %p253, %p254
    %p256 = scmp.ne.s32.totalorder %s248, %s250
    %p257 = scmp.eq.s32.totalorder %s25, 1
    %p258 = por %p256, %p257
    %p259 = scmp.ne.s32.totalorder %s250, %s251
    %p260 = scmp.eq.s32.totalorder %s25, 0
    %p261 = por %p259, %p260
    %p262 = scmp.ne.s32.totalorder %s250, %s251
    %p263 = scmp.eq.s32.totalorder %s26, 1
    %p264 = por %p262, %p263
    %p266 = scmp.ne.s32.totalorder %s251, %s265
    %p267 = scmp.eq.s32.totalorder %s26, 0
    %p268 = por %p266, %p267
    %s270 = sadd.s32 %s269, 1
    %p273 = scmp.eq.s32.totalorder %s20, 1
    %p274 = scmp.ne.s32.totalorder %s269, %s271
    %p275 = scmp.eq.s32.totalorder %s20, 0
    %p276 = por %p274, %p275
    %p277 = scmp.ne.s32.totalorder %s269, %s271
    %p278 = scmp.eq.s32.totalorder %s25, 1
    %p279 = por %p277, %p278
    %p280 = scmp.ne.s32.totalorder %s271, %s272
    %p281 = scmp.eq.s32.totalorder %s25, 0
    %p282 = por %p280, %p281
    %p283 = scmp.ne.s32.totalorder %s271, %s272
    %p284 = scmp.eq.s32.totalorder %s26, 1
    %p285 = por %p283, %p284
    %p287 = scmp.ne.s32.totalorder %s272, %s286
    %p288 = scmp.eq.s32.totalorder %s26, 0
    %p289 = por %p287, %p288
    %s291 = sadd.s32 %s290, 1
    %p294 = scmp.eq.s32.totalorder %s20, 1
    %p295 = scmp.ne.s32.totalorder %s290, %s292
    %p296 = scmp.eq.s32.totalorder %s20, 0
    %p297 = por %p295, %p296
    %p298 = scmp.ne.s32.totalorder %s290, %s292
    %p299 = scmp.eq.s32.totalorder %s25, 1
    %p300 = por %p298, %p299
    %p301 = scmp.ne.s32.totalorder %s292, %s293
    %p302 = scmp.eq.s32.totalorder %s25, 0
    %p303 = por %p301, %p302
    %p304 = scmp.ne.s32.totalorder %s292, %s293
    %p305 = scmp.eq.s32.totalorder %s26, 1
    %p306 = por %p304, %p305
    %p308 = scmp.ne.s32.totalorder %s293, %s307
    %p309 = scmp.eq.s32.totalorder %s26, 0
    %p310 = por %p308, %p309
    %s312 = sadd.s32 %s311, 1
    %p315 = scmp.eq.s32.totalorder %s20, 1
    %p316 = scmp.ne.s32.totalorder %s311, %s313
    %p317 = scmp.eq.s32.totalorder %s20, 0
    %p318 = por %p316, %p317
    %p319 = scmp.ne.s32.totalorder %s311, %s313
    %p320 = scmp.eq.s32.totalorder %s25, 1
    %p321 = por %p319, %p320
    %p322 = scmp.ne.s32.totalorder %s313, %s314
    %p323 = scmp.eq.s32.totalorder %s25, 0
    %p324 = por %p322, %p323
    %p325 = scmp.ne.s32.totalorder %s313, %s314
    %p326 = scmp.eq.s32.totalorder %s26, 1
    %p327 = por %p325, %p326
    %p329 = scmp.ne.s32.totalorder %s314, %s328
    %p330 = scmp.eq.s32.totalorder %s26, 0
    %p331 = por %p329, %p330
    %s332 = ssub.s32 %s20, %s27
    %p333 = scmp.eq.s32.totalorder %s332, 0
    %s335 = sadd.s32 %s334, 1
    %s336 = scalar_select %p333, %s334, %s335
    %p339 = pneg %p333
    %p340 = scmp.eq.s32.totalorder %s20, 1
    %p341 = por %p339, %p340
    %p342 = scmp.ne.s32.totalorder %s334, %s337
    %p343 = scmp.eq.s32.totalorder %s20, 0
    %p344 = por %p342, %p343
    %p345 = scmp.ne.s32.totalorder %s334, %s337
    %p346 = scmp.eq.s32.totalorder %s25, 1
    %p347 = por %p345, %p346
    %p348 = scmp.ne.s32.totalorder %s337, %s338
    %p349 = scmp.eq.s32.totalorder %s25, 0
    %p350 = por %p348, %p349
    %p351 = scmp.ne.s32.totalorder %s337, %s338
    %p352 = scmp.eq.s32.totalorder %s26, 1
    %p353 = por %p351, %p352
    %p355 = scmp.ne.s32.totalorder %s338, %s354
    %p356 = scmp.eq.s32.totalorder %s26, 0
    %p357 = por %p355, %p356
    %p358 = scmp.le.s32.totalorder 1, %s20
    %p359 = scmp.lt.s32.totalorder %s20, 3
    %p360 = pnand %p358, %p359
    %p361 = pneg %p360
    // Predicated region
    $region9: #{bert_forward.5} parent=5 // pred_check
      _
    $region10: #{bert_forward.5} parent=5 // pred_check_branch
      %363 = sbr.rel (%p360) target = $region12
    $region11: #{bert_forward.5} parent=5 // pred_region
      %s364 = ssub.s32 %s20, 1
      // Predicated region
      $region13: #{bert_forward.5} parent=11 // pred_check
        %p365 = pneg %p93
      $region14: #{bert_forward.5} parent=11 // pred_check_branch
        %367 = sbr.rel (%p365) target = $region16
      $region15: #{bert_forward.5} parent=11 // pred_region
        _
      $region16: #{bert_forward.5} parent=11 // pred_fallthru
        _
      // Predicated region
      $region17: #{bert_forward.5} parent=11 // pred_check
        %p368 = pneg %p114
      $region18: #{bert_forward.5} parent=11 // pred_check_branch
        %370 = sbr.rel (%p368) target = $region20
      $region19: #{bert_forward.5} parent=11 // pred_region
        _
      $region20: #{bert_forward.5} parent=11 // pred_fallthru
        _
      // Predicated region
      $region21: #{bert_forward.5} parent=11 // pred_check
        %p371 = pneg %p135
      $region22: #{bert_forward.5} parent=11 // pred_check_branch
        %373 = sbr.rel (%p371) target = $region24
      $region23: #{bert_forward.5} parent=11 // pred_region
        _
      $region24: #{bert_forward.5} parent=11 // pred_fallthru
        _
      // Predicated region
      $region25: #{bert_forward.5} parent=11 // pred_check
        %p374 = pneg %p156
      $region26: #{bert_forward.5} parent=11 // pred_check_branch
        %376 = sbr.rel (%p374) target = $region28
      $region27: #{bert_forward.5} parent=11 // pred_region
        _
      $region28: #{bert_forward.5} parent=11 // pred_fallthru
        _
      // Predicated region
      $region29: #{bert_forward.5} parent=11 // pred_check
        %p377 = pneg %p177
      $region30: #{bert_forward.5} parent=11 // pred_check_branch
        %379 = sbr.rel (%p377) target = $region32
      $region31: #{bert_forward.5} parent=11 // pred_region
        _
      $region32: #{bert_forward.5} parent=11 // pred_fallthru
        _
      // Predicated region
      $region33: #{bert_forward.5} parent=11 // pred_check
        %p380 = pneg %p198
      $region34: #{bert_forward.5} parent=11 // pred_check_branch
        %382 = sbr.rel (%p380) target = $region36
      $region35: #{bert_forward.5} parent=11 // pred_region
        _
      $region36: #{bert_forward.5} parent=11 // pred_fallthru
        _
      // Predicated region
      $region37: #{bert_forward.5} parent=11 // pred_check
        %p383 = pneg %p219
      $region38: #{bert_forward.5} parent=11 // pred_check_branch
        %385 = sbr.rel (%p383) target = $region40
      $region39: #{bert_forward.5} parent=11 // pred_region
        _
      $region40: #{bert_forward.5} parent=11 // pred_fallthru
        _
      // Predicated region
      $region41: #{bert_forward.5} parent=11 // pred_check
        %p386 = pneg %p240
      $region42: #{bert_forward.5} parent=11 // pred_check_branch
        %388 = sbr.rel (%p386) target = $region44
      $region43: #{bert_forward.5} parent=11 // pred_region
        _
      $region44: #{bert_forward.5} parent=11 // pred_fallthru
        _
      // Predicated region
      $region45: #{bert_forward.5} parent=11 // pred_check
        %p389 = pneg %p261
      $region46: #{bert_forward.5} parent=11 // pred_check_branch
        %391 = sbr.rel (%p389) target = $region48
      $region47: #{bert_forward.5} parent=11 // pred_region
        _
      $region48: #{bert_forward.5} parent=11 // pred_fallthru
        _
      // Predicated region
      $region49: #{bert_forward.5} parent=11 // pred_check
        %p392 = pneg %p282
      $region50: #{bert_forward.5} parent=11 // pred_check_branch
        %394 = sbr.rel (%p392) target = $region52
      $region51: #{bert_forward.5} parent=11 // pred_region
        _
      $region52: #{bert_forward.5} parent=11 // pred_fallthru
        _
      // Predicated region
      $region53: #{bert_forward.5} parent=11 // pred_check
        %p395 = pneg %p303
      $region54: #{bert_forward.5} parent=11 // pred_check_branch
        %397 = sbr.rel (%p395) target = $region56
      $region55: #{bert_forward.5} parent=11 // pred_region
        _
      $region56: #{bert_forward.5} parent=11 // pred_fallthru
        _
      // Predicated region
      $region57: #{bert_forward.5} parent=11 // pred_check
        %p398 = pneg %p324
      $region58: #{bert_forward.5} parent=11 // pred_check_branch
        %400 = sbr.rel (%p398) target = $region60
      $region59: #{bert_forward.5} parent=11 // pred_region
        _
      $region60: #{bert_forward.5} parent=11 // pred_fallthru
        _
    $region12: #{bert_forward.5} parent=5 // pred_fallthru
      _
    %p401 = scmp.lt.s32.totalorder %s20, 2
    // Predicated region
    $region61: #{bert_forward.5} parent=5 // pred_check
      %p402 = pneg %p401
    $region62: #{bert_forward.5} parent=5 // pred_check_branch
      %404 = sbr.rel (%p402) target = $region64
    $region63: #{bert_forward.5} parent=5 // pred_region
      // Predicated region
      $region65: #{bert_forward.5} parent=63 // pred_check
        %p405 = pneg %p40
      $region66: #{bert_forward.5} parent=63 // pred_check_branch
        %407 = sbr.rel (%p405) target = $region68
      $region67: #{bert_forward.5} parent=63 // pred_region
        %p408 = scmp.lt.s32.totalorder %s20, 1
        %s409 = scalar_select %p408, %s20, 1
        %s410 = smul.addr %s409, 4
        %s411 = scalar_lea.vmem %s0, %s410
      $region68: #{bert_forward.5} parent=63 // pred_fallthru
        _
      // Predicated region
      $region69: #{bert_forward.5} parent=63 // pred_check
        %p412 = pneg %p66
      $region70: #{bert_forward.5} parent=63 // pred_check_branch
        %414 = sbr.rel (%p412) target = $region72
      $region71: #{bert_forward.5} parent=63 // pred_region
        %p415 = scmp.lt.s32.totalorder %s20, 1
        %s416 = scalar_select %p415, %s20, 1
        %s417 = scalar_lea.vmem %s1, %s416
      $region72: #{bert_forward.5} parent=63 // pred_fallthru
        _
    $region64: #{bert_forward.5} parent=5 // pred_fallthru
      _
    %p418 = scmp.le.s32.totalorder 1, %s20
    %p419 = scmp.lt.s32.totalorder %s20, 3
    %p420 = pnand %p418, %p419
    %p421 = pneg %p420
    // Predicated region
    $region73: #{bert_forward.5} parent=5 // pred_check
      _
    $region74: #{bert_forward.5} parent=5 // pred_check_branch
      %423 = sbr.rel (%p420) target = $region76
    $region75: #{bert_forward.5} parent=5 // pred_region
      %s424 = ssub.s32 %s20, 1
      %p425 = scmp.lt.s32.totalorder %s25, 1
      %s426 = scalar_select %p425, %s25, 1
      %s427 = smul.addr %s426, 4
      %s428 = scalar_lea.vmem %s0, %s427
      %p429 = pneg %p46
      %p430 = pneg %p43
      %p431 = scmp.lt.s32.totalorder %s25, 1
      %s432 = scalar_select %p431, %s25, 1
      %s433 = scalar_lea.vmem %s1, %s432
      %p434 = pneg %p72
      %p435 = pneg %p69
      %p436 = pneg %p93
      %p437 = pneg %p90
      %p438 = pneg %p114
      %p439 = pneg %p111
      %p440 = pneg %p135
      %p441 = pneg %p132
      %p442 = pneg %p156
      %p443 = pneg %p153
      %p444 = pneg %p177
      %p445 = pneg %p174
      %p446 = pneg %p198
      %p447 = pneg %p195
      %p448 = pneg %p219
      %p449 = pneg %p216
      %p450 = pneg %p240
      %p451 = pneg %p237
      %p452 = pneg %p261
      %p453 = pneg %p258
      %p454 = pneg %p282
      %p455 = pneg %p279
      %p456 = pneg %p303
      %p457 = pneg %p300
      %p458 = pneg %p324
      %p459 = pneg %p321
      %p460 = pneg %p350
      %p461 = pneg %p347
      %p462 = scmp.lt.s32.totalorder %s25, 1
      %s463 = scalar_select %p462, %s25, 1
      %s464 = smul.addr %s463, 4
      %s465 = scalar_lea.vmem %s14, %s464
      %p466 = scmp.lt.s32.totalorder %s25, 1
      %s467 = scalar_select %p466, %s25, 1
      %s468 = smul.addr %s467, 4
      %s469 = scalar_lea.vmem %s0, %s468
      %p470 = scmp.lt.s32.totalorder %s25, 1
      %s471 = scalar_select %p470, %s25, 1
      %s472 = scalar_lea.vmem %s1, %s471
      %p473 = scmp.lt.s32.totalorder %s25, 1
      %s474 = scalar_select %p473, %s25, 1
      %s475 = smul.addr %s474, 4
      %s476 = scalar_lea.vmem %s14, %s475
      %v478 = vld [vmem:[%s469] sm:$0xf]
      %v479 = vunpack.c.l.bf16 %v478
      %v480 = vld [vmem:[%s472] sm:$0x1]
      %v481 = vld [vmem:[%s2] sm:$0xf]
      %v482 = vld [vmem:[%s2 + $0x4] sm:$0xf]
      %v483 = vld [vmem:[%s2 + $0x8] sm:$0xf]
      %v484 = vld [vmem:[%s2 + $0xc] sm:$0xf]
      %v485 = vld [vmem:[%s3] sm:$0x1]
      %v487 = vlaneseq
      %v488 = vshrl.u32 %v487, 7
      %v489 = vsub.s32 0, %v488
      %v490 = vrot.slane %v485, %v489
      %v496 = vunpack.c.l.b16 %v481
      %v497 = vunpack.c.l.b16 %v482
      %v498 = vunpack.c.l.b16 %v483
      %v499 = vunpack.c.l.b16 %v484
      %v500 = vpack.c.b16 %v497, %v496
      %v501 = vpack.c.b16 %v499, %v498
      %vm504 = vcmask 261120
      %v506 = vsel %vm504, %v478, 0
      %508 = vmatprep.subr.bf16.mxu0 0
      %509 = vmatpush1.bf16.msra.mxu0 %v500
      %510 = vmatprep.subr.bf16.mxu0 0
      %511 = vmatpush1.bf16.msra.mxu0 %v501
      %512 = vmatprep.subr.bf16.mxu0 0
      %513 = vmatpush1.bf16.msra.mxu0 0
      %514 = vmatprep.subr.bf16.mxu0 0
      %515 = vmatpush1.bf16.msra.mxu0 0
      %516 = vmatprep.subr.bf16.mxu0 0
      %517 = vmatpush1.bf16.msra.mxu0 0
      %518 = vmatprep.subr.bf16.mxu0 0
      %519 = vmatpush1.bf16.msra.mxu0 0
      %520 = vmatprep.subr.bf16.mxu0 0
      %521 = vmatpush1.bf16.msra.mxu0 0
      %522 = vmatprep.subr.bf16.mxu0 0
      %523 = vmatpush1.bf16.msra.mxu0 0
      %524 = vmatprep.subr.bf16.mxu0 0
      %525 = vmatpush1.bf16.msra.mxu0 0
      %526 = vmatprep.subr.bf16.mxu0 0
      %527 = vmatpush1.bf16.msra.mxu0 0
      %528 = vmatprep.subr.bf16.mxu0 0
      %529 = vmatpush1.bf16.msra.mxu0 0
      %530 = vmatprep.subr.bf16.mxu0 0
      %531 = vmatpush1.bf16.msra.mxu0 0
      %532 = vmatprep.subr.bf16.mxu0 0
      %533 = vmatpush1.bf16.msra.mxu0 0
      %534 = vmatprep.subr.bf16.mxu0 0
      %535 = vmatpush1.bf16.msra.mxu0 0
      %536 = vmatprep.subr.bf16.mxu0 0
      %537 = vmatpush1.bf16.msra.mxu0 0
      %538 = vmatprep.subr.bf16.mxu0 0
      %539 = vmatpush1.bf16.msra.mxu0 0
      %540 = vmatprep.mubr.bf16.mxu0 0
      %541 = vmatmul.mubr.bf16.gmra.mrb[0].mxu0 %v506
      %v542 = vpop.f32.mrb[0].mxu0
      %v543 = vadd.f32 %v490, %v542
      %v544 = vpop.f32.mrb[0].mxu0
      %v545 = vpop.f32.mrb[0].mxu0
      %v546 = vpop.f32.mrb[0].mxu0
      %547 = vdwg.mxu0
      %v548 = vpack.c.bf16 %v543, %v543
      %550 = vrot.lane.b32.xlu0 %v548, 120
      %v551 = vpop.permute.xlu0 %550
      %552 = vrot.lane.b32.xlu0 %v548, 112
      %v553 = vpop.permute.xlu0 %552
      %554 = vrot.lane.b32.xlu0 %v548, 104
      %v555 = vpop.permute.xlu0 %554
      %v557 = vlaneseq
      %v558 = vshrl.u32 %v557, 7
      %v559 = vsub.s32 0, %v558
      %v560 = vrot.slane %v480, %v559
      %562 = vrot.lane.b32.xlu0 %v548, 96
      %v563 = vpop.permute.xlu0 %562
      %vm564 = vcmask 64512
      %v566 = vsel %vm564, %v548, 0
      %v569 = vsel %vm564, %v563, 0
      %571 = vmatprep.subr.bf16.mxu0 0
      %572 = vmatpush1.bf16.xpose.msra.mxu0 %v569
      %573 = vmatprep.subr.bf16.mxu0 0
      %574 = vmatpush1.bf16.xpose.msra.mxu0 0
      %575 = vmatprep.subr.bf16.mxu0 0
      %576 = vmatpush1.bf16.xpose.msra.mxu0 0
      %577 = vmatprep.subr.bf16.mxu0 0
      %578 = vmatpush1.bf16.xpose.msra.mxu0 0
      %579 = vmatprep.subr.bf16.mxu0 0
      %580 = vmatpush1.bf16.xpose.msra.mxu0 0
      %581 = vmatprep.subr.bf16.mxu0 0
      %582 = vmatpush1.bf16.xpose.msra.mxu0 0
      %583 = vmatprep.subr.bf16.mxu0 0
      %584 = vmatpush1.bf16.xpose.msra.mxu0 0
      %585 = vmatprep.subr.bf16.mxu0 0
      %586 = vmatpush1.bf16.xpose.msra.mxu0 0
      %587 = vmatprep.subr.bf16.mxu0 0
      %588 = vmatpush1.bf16.xpose.msra.mxu0 0
      %589 = vmatprep.subr.bf16.mxu0 0
      %590 = vmatpush1.bf16.xpose.msra.mxu0 0
      %591 = vmatprep.subr.bf16.mxu0 0
      %592 = vmatpush1.bf16.xpose.msra.mxu0 0
      %593 = vmatprep.subr.bf16.mxu0 0
      %594 = vmatpush1.bf16.xpose.msra.mxu0 0
      %595 = vmatprep.subr.bf16.mxu0 0
      %596 = vmatpush1.bf16.xpose.msra.mxu0 0
      %597 = vmatprep.subr.bf16.mxu0 0
      %598 = vmatpush1.bf16.xpose.msra.mxu0 0
      %599 = vmatprep.subr.bf16.mxu0 0
      %600 = vmatpush1.bf16.xpose.msra.mxu0 0
      %601 = vmatprep.subr.bf16.mxu0 0
      %602 = vmatpush1.bf16.xpose.msra.mxu0 0
      %603 = vmatprep.mubr.bf16.mxu0 0
      %604 = vmatmul.mubr.bf16.gmra.mrb[0].mxu0 %v566
      %v605 = vpop.f32.mrb[0].mxu0
      %v606 = vadd.f32 %v560, %v605
      %v607 = vpop.f32.mrb[0].mxu0
      %v608 = vpop.f32.mrb[0].mxu0
      %v609 = vpop.f32.mrb[0].mxu0
      %610 = vdwg.mxu0
      %611 = vrot.lane.b32.xlu0 %v551, 96
      %v612 = vpop.permute.xlu0 %611
      %v614 = vsel %vm564, %v551, 0
      %v617 = vsel %vm564, %v612, 0
      %619 = vmatprep.subr.bf16.mxu0 0
      %620 = vmatpush1.bf16.xpose.msra.mxu0 %v617
      %621 = vmatprep.subr.bf16.mxu0 0
      %622 = vmatpush1.bf16.xpose.msra.mxu0 0
      %623 = vmatprep.subr.bf16.mxu0 0
      %624 = vmatpush1.bf16.xpose.msra.mxu0 0
      %625 = vmatprep.subr.bf16.mxu0 0
      %626 = vmatpush1.bf16.xpose.msra.mxu0 0
      %627 = vmatprep.subr.bf16.mxu0 0
      %628 = vmatpush1.bf16.xpose.msra.mxu0 0
      %629 = vmatprep.subr.bf16.mxu0 0
      %630 = vmatpush1.bf16.xpose.msra.mxu0 0
      %631 = vmatprep.subr.bf16.mxu0 0
      %632 = vmatpush1.bf16.xpose.msra.mxu0 0
      %633 = vmatprep.subr.bf16.mxu0 0
      %634 = vmatpush1.bf16.xpose.msra.mxu0 0
      %635 = vmatprep.subr.bf16.mxu0 0
      %636 = vmatpush1.bf16.xpose.msra.mxu0 0
      %637 = vmatprep.subr.bf16.mxu0 0
      %638 = vmatpush1.bf16.xpose.msra.mxu0 0
      %639 = vmatprep.subr.bf16.mxu0 0
      %640 = vmatpush1.bf16.xpose.msra.mxu0 0
      %641 = vmatprep.subr.bf16.mxu0 0
      %642 = vmatpush1.bf16.xpose.msra.mxu0 0
      %643 = vmatprep.subr.bf16.mxu0 0
      %644 = vmatpush1.bf16.xpose.msra.mxu0 0
      %645 = vmatprep.subr.bf16.mxu0 0
      %646 = vmatpush1.bf16.xpose.msra.mxu0 0
      %647 = vmatprep.subr.bf16.mxu0 0
      %648 = vmatpush1.bf16.xpose.msra.mxu0 0
      %649 = vmatprep.subr.bf16.mxu0 0
      %650 = vmatpush1.bf16.xpose.msra.mxu0 0
      %651 = vmatprep.mubr.bf16.mxu0 0
      %652 = vmatmul.mubr.bf16.gmra.mrb[0].mxu0 %v614
      %v653 = vpop.f32.mrb[0].mxu0
      %v654 = vadd.f32 %v560, %v653
      %v655 = vpop.f32.mrb[0].mxu0
      %v656 = vpop.f32.mrb[0].mxu0
      %v657 = vpop.f32.mrb[0].mxu0
      %658 = vdwg.mxu0
      %659 = vrot.lane.b32.xlu0 %v553, 96
      %v660 = vpop.permute.xlu0 %659
      %v662 = vsel %vm564, %v553, 0
      %v665 = vsel %vm564, %v660, 0
      %667 = vmatprep.subr.bf16.mxu0 0
      %668 = vmatpush1.bf16.xpose.msra.mxu0 %v665
      %669 = vmatprep.subr.bf16.mxu0 0
      %670 = vmatpush1.bf16.xpose.msra.mxu0 0
      %671 = vmatprep.subr.bf16.mxu0 0
      %672 = vmatpush1.bf16.xpose.msra.mxu0 0
      %673 = vmatprep.subr.bf16.mxu0 0
      %674 = vmatpush1.bf16.xpose.msra.mxu0 0
      %675 = vmatprep.subr.bf16.mxu0 0
      %676 = vmatpush1.bf16.xpose.msra.mxu0 0
      %677 = vmatprep.subr.bf16.mxu0 0
      %678 = vmatpush1.bf16.xpose.msra.mxu0 0
      %679 = vmatprep.subr.bf16.mxu0 0
      %680 = vmatpush1.bf16.xpose.msra.mxu0 0
      %681 = vmatprep.subr.bf16.mxu0 0
      %682 = vmatpush1.bf16.xpose.msra.mxu0 0
      %683 = vmatprep.subr.bf16.mxu0 0
      %684 = vmatpush1.bf16.xpose.msra.mxu0 0
      %685 = vmatprep.subr.bf16.mxu0 0
      %686 = vmatpush1.bf16.xpose.msra.mxu0 0
      %687 = vmatprep.subr.bf16.mxu0 0
      %688 = vmatpush1.bf16.xpose.msra.mxu0 0
      %689 = vmatprep.subr.bf16.mxu0 0
      %690 = vmatpush1.bf16.xpose.msra.mxu0 0
      %691 = vmatprep.subr.bf16.mxu0 0
      %692 = vmatpush1.bf16.xpose.msra.mxu0 0
      %693 = vmatprep.subr.bf16.mxu0 0
      %694 = vmatpush1.bf16.xpose.msra.mxu0 0
      %695 = vmatprep.subr.bf16.mxu0 0
      %696 = vmatpush1.bf16.xpose.msra.mxu0 0
      %697 = vmatprep.subr.bf16.mxu0 0
      %698 = vmatpush1.bf16.xpose.msra.mxu0 0
      %699 = vmatprep.mubr.bf16.mxu0 0
      %700 = vmatmul.mubr.bf16.gmra.mrb[0].mxu0 %v662
      %v701 = vpop.f32.mrb[0].mxu0
      %v702 = vadd.f32 %v560, %v701
      %v703 = vpop.f32.mrb[0].mxu0
      %v704 = vpop.f32.mrb[0].mxu0
      %v705 = vpop.f32.mrb[0].mxu0
      %706 = vdwg.mxu0
      %707 = vrot.lane.b32.xlu0 %v555, 96
      %v708 = vpop.permute.xlu0 %707
      %v710 = vsel %vm564, %v555, 0
      %v713 = vsel %vm564, %v708, 0
      %715 = vmatprep.subr.bf16.mxu0 0
      %716 = vmatpush1.bf16.xpose.msra.mxu0 %v713
      %717 = vmatprep.subr.bf16.mxu0 0
      %718 = vmatpush1.bf16.xpose.msra.mxu0 0
      %719 = vmatprep.subr.bf16.mxu0 0
      %720 = vmatpush1.bf16.xpose.msra.mxu0 0
      %721 = vmatprep.subr.bf16.mxu0 0
      %722 = vmatpush1.bf16.xpose.msra.mxu0 0
      %723 = vmatprep.subr.bf16.mxu0 0
      %724 = vmatpush1.bf16.xpose.msra.mxu0 0
      %725 = vmatprep.subr.bf16.mxu0 0
      %726 = vmatpush1.bf16.xpose.msra.mxu0 0
      %727 = vmatprep.subr.bf16.mxu0 0
      %728 = vmatpush1.bf16.xpose.msra.mxu0 0
      %729 = vmatprep.subr.bf16.mxu0 0
      %730 = vmatpush1.bf16.xpose.msra.mxu0 0
      %731 = vmatprep.subr.bf16.mxu0 0
      %732 = vmatpush1.bf16.xpose.msra.mxu0 0
      %733 = vmatprep.subr.bf16.mxu0 0
      %734 = vmatpush1.bf16.xpose.msra.mxu0 0
      %735 = vmatprep.subr.bf16.mxu0 0
      %736 = vmatpush1.bf16.xpose.msra.mxu0 0
      %737 = vmatprep.subr.bf16.mxu0 0
      %738 = vmatpush1.bf16.xpose.msra.mxu0 0
      %739 = vmatprep.subr.bf16.mxu0 0
      %740 = vmatpush1.bf16.xpose.msra.mxu0 0
      %741 = vmatprep.subr.bf16.mxu0 0
      %742 = vmatpush1.bf16.xpose.msra.mxu0 0
      %743 = vmatprep.subr.bf16.mxu0 0
      %744 = vmatpush1.bf16.xpose.msra.mxu0 0
      %745 = vmatprep.subr.bf16.mxu0 0
      %746 = vmatpush1.bf16.xpose.msra.mxu0 0
      %747 = vmatprep.mubr.bf16.mxu0 0
      %748 = vmatmul.mubr.bf16.gmra.mrb[0].mxu0 %v710
      %v749 = vpop.f32.mrb[0].mxu0
      %v750 = vadd.f32 %v560, %v749
      %v751 = vpop.f32.mrb[0].mxu0
      %v752 = vpop.f32.mrb[0].mxu0
      %v753 = vpop.f32.mrb[0].mxu0
      %754 = vdwg.mxu0
      %v755 = vsel %vm564, %v606, -inf
      %756 = vmax.xlane.f32.xlu0 %v755
      %v757 = vpop.xlane.xlu0 %756
      %v758 = vsel %vm564, %v654, -inf
      %759 = vmax.xlane.f32.xlu0 %v758
      %v760 = vpop.xlane.xlu0 %759
      %v761 = vsel %vm564, %v702, -inf
      %762 = vmax.xlane.f32.xlu0 %v761
      %v763 = vpop.xlane.xlu0 %762
      %v764 = vsel %vm564, %v750, -inf
      %765 = vmax.xlane.f32.xlu0 %v764
      %v766 = vpop.xlane.xlu0 %765
      %v767 = vsub.f32 %v606, %v757
      %v768 = vsub.f32 %v654, %v760
      %v769 = vsub.f32 %v702, %v763
      %v770 = vsub.f32 %v750, %v766
      %v771 = vmul.f32 %v767, 1.442695
      %v772 = vpow.pop %v771
      %v773 = vmul.f32 %v768, 1.442695
      %v774 = vpow.pop %v773
      %v775 = vmul.f32 %v769, 1.442695
      %v776 = vpow.pop %v775
      %v777 = vmul.f32 %v770, 1.442695
      %v778 = vpow.pop %v777
      %v779 = vsel %vm564, %v772, 0.0
      %780 = vadd.xlane.f32.xlu0 %v779
      %v781 = vpop.xlane.xlu0 %780
      %v782 = vsel %vm564, %v774, 0.0
      %783 = vadd.xlane.f32.xlu0 %v782
      %v784 = vpop.xlane.xlu0 %783
      %v785 = vsel %vm564, %v776, 0.0
      %786 = vadd.xlane.f32.xlu0 %v785
      %v787 = vpop.xlane.xlu0 %786
      %v788 = vsel %vm564, %v778, 0.0
      %789 = vadd.xlane.f32.xlu0 %v788
      %v790 = vpop.xlane.xlu0 %789
      %v791 = vrcp.pop %v781
      %v792 = vrcp.pop %v784
      %v793 = vrcp.pop %v787
      %v794 = vrcp.pop %v790
      %v795 = vmul.f32 %v772, %v791
      %v796 = vmul.f32 %v774, %v792
      %v797 = vmul.f32 %v776, %v793
      %v798 = vmul.f32 %v778, %v794
      %v799 = vpack.c.bf16 %v795, %v795
      %v800 = vpack.c.bf16 %v796, %v796
      %v801 = vpack.c.bf16 %v797, %v797
      %v802 = vpack.c.bf16 %v798, %v798
      %803 = vrot.lane.b32.xlu0 %v548, 64
      %v804 = vpop.permute.xlu0 %803
      %v806 = vsel %vm564, %v799, 0
      %vm808 = vcmask 1043456
      %v810 = vsel %vm808, %v804, 0
      %812 = vmatprep.subr.bf16.mxu0 0
      %813 = vmatpush1.bf16.msra.mxu0 %v810
      %814 = vmatprep.subr.bf16.mxu0 0
      %815 = vmatpush1.bf16.msra.mxu0 0
      %816 = vmatprep.subr.bf16.mxu0 0
      %817 = vmatpush1.bf16.msra.mxu0 0
      %818 = vmatprep.subr.bf16.mxu0 0
      %819 = vmatpush1.bf16.msra.mxu0 0
      %820 = vmatprep.subr.bf16.mxu0 0
      %821 = vmatpush1.bf16.msra.mxu0 0
      %822 = vmatprep.subr.bf16.mxu0 0
      %823 = vmatpush1.bf16.msra.mxu0 0
      %824 = vmatprep.subr.bf16.mxu0 0
      %825 = vmatpush1.bf16.msra.mxu0 0
      %826 = vmatprep.subr.bf16.mxu0 0
      %827 = vmatpush1.bf16.msra.mxu0 0
      %828 = vmatprep.subr.bf16.mxu0 0
      %829 = vmatpush1.bf16.msra.mxu0 0
      %830 = vmatprep.subr.bf16.mxu0 0
      %831 = vmatpush1.bf16.msra.mxu0 0
      %832 = vmatprep.subr.bf16.mxu0 0
      %833 = vmatpush1.bf16.msra.mxu0 0
      %834 = vmatprep.subr.bf16.mxu0 0
      %835 = vmatpush1.bf16.msra.mxu0 0
      %836 = vmatprep.subr.bf16.mxu0 0
      %837 = vmatpush1.bf16.msra.mxu0 0
      %838 = vmatprep.subr.bf16.mxu0 0
      %839 = vmatpush1.bf16.msra.mxu0 0
      %840 = vmatprep.subr.bf16.mxu0 0
      %841 = vmatpush1.bf16.msra.mxu0 0
      %842 = vmatprep.subr.bf16.mxu0 0
      %843 = vmatpush1.bf16.msra.mxu0 0
      %844 = vmatprep.mubr.bf16.mxu0 0
      %845 = vmatmul.mubr.bf16.gmra.mrb[0].mxu0 %v806
      %v846 = vpop.f32.mrb[0].mxu0
      %v847 = vadd.f32 0.0, %v846
      %v848 = vpop.f32.mrb[0].mxu0
      %v849 = vpop.f32.mrb[0].mxu0
      %v850 = vpop.f32.mrb[0].mxu0
      %851 = vdwg.mxu0
      %852 = vrot.lane.b32.xlu0 %v551, 64
      %v853 = vpop.permute.xlu0 %852
      %v855 = vsel %vm564, %v800, 0
      %v858 = vsel %vm808, %v853, 0
      %860 = vmatprep.subr.bf16.mxu0 0
      %861 = vmatpush1.bf16.msra.mxu0 %v858
      %862 = vmatprep.subr.bf16.mxu0 0
      %863 = vmatpush1.bf16.msra.mxu0 0
      %864 = vmatprep.subr.bf16.mxu0 0
      %865 = vmatpush1.bf16.msra.mxu0 0
      %866 = vmatprep.subr.bf16.mxu0 0
      %867 = vmatpush1.bf16.msra.mxu0 0
      %868 = vmatprep.subr.bf16.mxu0 0
      %869 = vmatpush1.bf16.msra.mxu0 0
      %870 = vmatprep.subr.bf16.mxu0 0
      %871 = vmatpush1.bf16.msra.mxu0 0
      %872 = vmatprep.subr.bf16.mxu0 0
      %873 = vmatpush1.bf16.msra.mxu0 0
      %874 = vmatprep.subr.bf16.mxu0 0
      %875 = vmatpush1.bf16.msra.mxu0 0
      %876 = vmatprep.subr.bf16.mxu0 0
      %877 = vmatpush1.bf16.msra.mxu0 0
      %878 = vmatprep.subr.bf16.mxu0 0
      %879 = vmatpush1.bf16.msra.mxu0 0
      %880 = vmatprep.subr.bf16.mxu0 0
      %881 = vmatpush1.bf16.msra.mxu0 0
      %882 = vmatprep.subr.bf16.mxu0 0
      %883 = vmatpush1.bf16.msra.mxu0 0
      %884 = vmatprep.subr.bf16.mxu0 0
      %885 = vmatpush1.bf16.msra.mxu0 0
      %886 = vmatprep.subr.bf16.mxu0 0
      %887 = vmatpush1.bf16.msra.mxu0 0
      %888 = vmatprep.subr.bf16.mxu0 0
      %889 = vmatpush1.bf16.msra.mxu0 0
      %890 = vmatprep.subr.bf16.mxu0 0
      %891 = vmatpush1.bf16.msra.mxu0 0
      %892 = vmatprep.mubr.bf16.mxu0 0
      %893 = vmatmul.mubr.bf16.gmra.mrb[0].mxu0 %v855
      %v894 = vpop.f32.mrb[0].mxu0
      %v895 = vadd.f32 0.0, %v894
      %v896 = vpop.f32.mrb[0].mxu0
      %v897 = vpop.f32.mrb[0].mxu0
      %v898 = vpop.f32.mrb[0].mxu0
      %899 = vdwg.mxu0
      %900 = vrot.lane.b32.xlu0 %v553, 64
      %v901 = vpop.permute.xlu0 %900
      %v903 = vsel %vm564, %v801, 0
      %v906 = vsel %vm808, %v901, 0
      %908 = vmatprep.subr.bf16.mxu0 0
      %909 = vmatpush1.bf16.msra.mxu0 %v906
      %910 = vmatprep.subr.bf16.mxu0 0
      %911 = vmatpush1.bf16.msra.mxu0 0
      %912 = vmatprep.subr.bf16.mxu0 0
      %913 = vmatpush1.bf16.msra.mxu0 0
      %914 = vmatprep.subr.bf16.mxu0 0
      %915 = vmatpush1.bf16.msra.mxu0 0
      %916 = vmatprep.subr.bf16.mxu0 0
      %917 = vmatpush1.bf16.msra.mxu0 0
      %918 = vmatprep.subr.bf16.mxu0 0
      %919 = vmatpush1.bf16.msra.mxu0 0
      %920 = vmatprep.subr.bf16.mxu0 0
      %921 = vmatpush1.bf16.msra.mxu0 0
      %922 = vmatprep.subr.bf16.mxu0 0
      %923 = vmatpush1.bf16.msra.mxu0 0
      %924 = vmatprep.subr.bf16.mxu0 0
      %925 = vmatpush1.bf16.msra.mxu0 0
      %926 = vmatprep.subr.bf16.mxu0 0
      %927 = vmatpush1.bf16.msra.mxu0 0
      %928 = vmatprep.subr.bf16.mxu0 0
      %929 = vmatpush1.bf16.msra.mxu0 0
      %930 = vmatprep.subr.bf16.mxu0 0
      %931 = vmatpush1.bf16.msra.mxu0 0
      %932 = vmatprep.subr.bf16.mxu0 0
      %933 = vmatpush1.bf16.msra.mxu0 0
      %934 = vmatprep.subr.bf16.mxu0 0
      %935 = vmatpush1.bf16.msra.mxu0 0
      %936 = vmatprep.subr.bf16.mxu0 0
      %937 = vmatpush1.bf16.msra.mxu0 0
      %938 = vmatprep.subr.bf16.mxu0 0
      %939 = vmatpush1.bf16.msra.mxu0 0
      %940 = vmatprep.mubr.bf16.mxu0 0
      %941 = vmatmul.mubr.bf16.gmra.mrb[0].mxu0 %v903
      %v942 = vpop.f32.mrb[0].mxu0
      %v943 = vadd.f32 0.0, %v942
      %v944 = vpop.f32.mrb[0].mxu0
      %v945 = vpop.f32.mrb[0].mxu0
      %v946 = vpop.f32.mrb[0].mxu0
      %947 = vdwg.mxu0
      %948 = vrot.lane.b32.xlu0 %v555, 64
      %v949 = vpop.permute.xlu0 %948
      %v951 = vsel %vm564, %v802, 0
      %v954 = vsel %vm808, %v949, 0
      %956 = vmatprep.subr.bf16.mxu0 0
      %957 = vmatpush1.bf16.msra.mxu0 %v954
      %958 = vmatprep.subr.bf16.mxu0 0
      %959 = vmatpush1.bf16.msra.mxu0 0
      %960 = vmatprep.subr.bf16.mxu0 0
      %961 = vmatpush1.bf16.msra.mxu0 0
      %962 = vmatprep.subr.bf16.mxu0 0
      %963 = vmatpush1.bf16.msra.mxu0 0
      %964 = vmatprep.subr.bf16.mxu0 0
      %965 = vmatpush1.bf16.msra.mxu0 0
      %966 = vmatprep.subr.bf16.mxu0 0
      %967 = vmatpush1.bf16.msra.mxu0 0
      %968 = vmatprep.subr.bf16.mxu0 0
      %969 = vmatpush1.bf16.msra.mxu0 0
      %970 = vmatprep.subr.bf16.mxu0 0
      %971 = vmatpush1.bf16.msra.mxu0 0
      %972 = vmatprep.subr.bf16.mxu0 0
      %973 = vmatpush1.bf16.msra.mxu0 0
      %974 = vmatprep.subr.bf16.mxu0 0
      %975 = vmatpush1.bf16.msra.mxu0 0
      %976 = vmatprep.subr.bf16.mxu0 0
      %977 = vmatpush1.bf16.msra.mxu0 0
      %978 = vmatprep.subr.bf16.mxu0 0
      %979 = vmatpush1.bf16.msra.mxu0 0
      %980 = vmatprep.subr.bf16.mxu0 0
      %981 = vmatpush1.bf16.msra.mxu0 0
      %982 = vmatprep.subr.bf16.mxu0 0
      %983 = vmatpush1.bf16.msra.mxu0 0
      %984 = vmatprep.subr.bf16.mxu0 0
      %985 = vmatpush1.bf16.msra.mxu0 0
      %986 = vmatprep.subr.bf16.mxu0 0
      %987 = vmatpush1.bf16.msra.mxu0 0
      %988 = vmatprep.mubr.bf16.mxu0 0
      %989 = vmatmul.mubr.bf16.gmra.mrb[0].mxu0 %v951
      %v990 = vpop.f32.mrb[0].mxu0
      %v991 = vadd.f32 0.0, %v990
      %v992 = vpop.f32.mrb[0].mxu0
      %v993 = vpop.f32.mrb[0].mxu0
      %v994 = vpop.f32.mrb[0].mxu0
      %995 = vdwg.mxu0
      %v996 = vpack.c.bf16 %v847, %v847
      %v997 = vpack.c.bf16 %v895, %v895
      %v998 = vpack.c.bf16 %v943, %v943
      %v999 = vpack.c.bf16 %v991, %v991
      %1001 = vrot.lane.b32.xlu0 %v997, 8
      %v1002 = vpop.permute.xlu0 %1001
      %1004 = vrot.lane.b32.xlu0 %v998, 16
      %v1005 = vpop.permute.xlu0 %1004
      %1007 = vrot.lane.b32.xlu0 %v999, 24
      %v1008 = vpop.permute.xlu0 %1007
      %v1011 = vsel %vm564, %v996, %v1002
      %vm1012 = vcmask 130048
      %v1014 = vsel %vm1012, %v1011, %v1005
      %vm1015 = vcmask 195584
      %v1017 = vsel %vm1015, %v1014, %v1008
      %v1018 = vld [vmem:[%s4] sm:$0xf]
      %v1019 = vld [vmem:[%s4 + $0x4] sm:$0xf]
      %v1020 = vld [vmem:[%s4 + $0x8] sm:$0xf]
      %v1021 = vld [vmem:[%s4 + $0xc] sm:$0xf]
      %v1022 = vld [vmem:[%s5] sm:$0x1]
      %v1024 = vlaneseq
      %v1025 = vshrl.u32 %v1024, 7
      %v1026 = vsub.s32 0, %v1025
      %v1027 = vrot.slane %v1022, %v1026
      %v1033 = vunpack.c.l.b16 %v1018
      %v1034 = vunpack.c.l.b16 %v1019
      %v1035 = vunpack.c.l.b16 %v1020
      %v1036 = vunpack.c.l.b16 %v1021
      %v1037 = vpack.c.b16 %v1034, %v1033
      %v1038 = vpack.c.b16 %v1036, %v1035
      %v1041 = vsel %vm504, %v1017, 0
      %1043 = vmatprep.subr.bf16.mxu0 0
      %1044 = vmatpush1.bf16.msra.mxu0 %v1037
      %1045 = vmatprep.subr.bf16.mxu0 0
      %1046 = vmatpush1.bf16.msra.mxu0 %v1038
      %1047 = vmatprep.subr.bf16.mxu0 0
      %1048 = vmatpush1.bf16.msra.mxu0 0
      %1049 = vmatprep.subr.bf16.mxu0 0
      %1050 = vmatpush1.bf16.msra.mxu0 0
      %1051 = vmatprep.subr.bf16.mxu0 0
      %1052 = vmatpush1.bf16.msra.mxu0 0
      %1053 = vmatprep.subr.bf16.mxu0 0
      %1054 = vmatpush1.bf16.msra.mxu0 0
      %1055 = vmatprep.subr.bf16.mxu0 0
      %1056 = vmatpush1.bf16.msra.mxu0 0
      %1057 = vmatprep.subr.bf16.mxu0 0
      %1058 = vmatpush1.bf16.msra.mxu0 0
      %1059 = vmatprep.subr.bf16.mxu0 0
      %1060 = vmatpush1.bf16.msra.mxu0 0
      %1061 = vmatprep.subr.bf16.mxu0 0
      %1062 = vmatpush1.bf16.msra.mxu0 0
      %1063 = vmatprep.subr.bf16.mxu0 0
      %1064 = vmatpush1.bf16.msra.mxu0 0
      %1065 = vmatprep.subr.bf16.mxu0 0
      %1066 = vmatpush1.bf16.msra.mxu0 0
      %1067 = vmatprep.subr.bf16.mxu0 0
      %1068 = vmatpush1.bf16.msra.mxu0 0
      %1069 = vmatprep.subr.bf16.mxu0 0
      %1070 = vmatpush1.bf16.msra.mxu0 0
      %1071 = vmatprep.subr.bf16.mxu0 0
      %1072 = vmatpush1.bf16.msra.mxu0 0
      %1073 = vmatprep.subr.bf16.mxu0 0
      %1074 = vmatpush1.bf16.msra.mxu0 0
      %1075 = vmatprep.mubr.bf16.mxu0 0
      %1076 = vmatmul.mubr.bf16.gmra.mrb[0].mxu0 %v1041
      %v1077 = vpop.f32.mrb[0].mxu0
      %v1078 = vadd.f32 %v1027, %v1077
      %v1079 = vpop.f32.mrb[0].mxu0
      %v1080 = vpop.f32.mrb[0].mxu0
      %v1081 = vpop.f32.mrb[0].mxu0
      %1082 = vdwg.mxu0
      %v1083 = vadd.f32 %v1078, %v479
      %v1084 = vld [vmem:[%s6] sm:$0x1]
      %v1085 = vld [vmem:[%s7] sm:$0x1]
      %v1086 = vsel %vm504, %v1083, 0.0
      %1087 = vadd.xlane.f32.xlu0 %v1086
      %v1088 = vpop.xlane.xlu0 %1087
      %v1089 = vrcp.pop 32.0
      %v1090 = vmul.f32 %v1088, %v1089
      %v1091 = vmul.f32 %v1083, %v1083
      %v1092 = vsel %vm504, %v1091, 0.0
      %1093 = vadd.xlane.f32.xlu0 %v1092
      %v1094 = vpop.xlane.xlu0 %1093
      %v1095 = vmul.f32 %v1094, %v1089
      %v1096 = vmul.f32 %v1090, %v1090
      %v1097 = vsub.f32 %v1095, %v1096
      %v1098 = vmax.f32 %v1097, 0.0
      %v1099 = vsub.f32 %v1083, %v1090
      %v1100 = vadd.f32 %v1098, 1e-12
      %v1101 = vrsqrt.pop %v1100
      %v1102 = vmul.f32 %v1099, %v1101
      %v1104 = vlaneseq
      %v1105 = vshrl.u32 %v1104, 7
      %v1106 = vsub.s32 0, %v1105
      %v1107 = vrot.slane %v1084, %v1106
      %v1109 = vmul.f32 %v1102, %v1107
      %v1111 = vlaneseq
      %v1112 = vshrl.u32 %v1111, 7
      %v1113 = vsub.s32 0, %v1112
      %v1114 = vrot.slane %v1085, %v1113
      %v1116 = vadd.f32 %v1109, %v1114
      %v1117 = vpack.c.bf16 %v1116, %v1116
      %v1118 = vld [vmem:[%s8] sm:$0xf]
      %v1119 = vld [vmem:[%s8 + $0x4] sm:$0xf]
      %v1120 = vld [vmem:[%s8 + $0x8] sm:$0xf]
      %v1121 = vld [vmem:[%s8 + $0xc] sm:$0xf]
      %v1122 = vld [vmem:[%s9] sm:$0x1]
      %v1124 = vlaneseq
      %v1125 = vshrl.u32 %v1124, 7
      %v1126 = vsub.s32 0, %v1125
      %v1127 = vrot.slane %v1122, %v1126
      %v1133 = vunpack.c.l.b16 %v1118
      %v1134 = vunpack.c.l.b16 %v1119
      %v1135 = vunpack.c.l.b16 %v1120
      %v1136 = vunpack.c.l.b16 %v1121
      %v1137 = vpack.c.b16 %v1134, %v1133
      %v1138 = vpack.c.b16 %v1136, %v1135
      %v1142 = vsel %vm504, %v1117, 0
      %1144 = vmatprep.subr.bf16.mxu0 0
      %1145 = vmatpush1.bf16.msra.mxu0 %v1137
      %1146 = vmatprep.subr.bf16.mxu0 0
      %1147 = vmatpush1.bf16.msra.mxu0 %v1138
      %1148 = vmatprep.subr.bf16.mxu0 0
      %1149 = vmatpush1.bf16.msra.mxu0 0
      %1150 = vmatprep.subr.bf16.mxu0 0
      %1151 = vmatpush1.bf16.msra.mxu0 0
      %1152 = vmatprep.subr.bf16.mxu0 0
      %1153 = vmatpush1.bf16.msra.mxu0 0
      %1154 = vmatprep.subr.bf16.mxu0 0
      %1155 = vmatpush1.bf16.msra.mxu0 0
      %1156 = vmatprep.subr.bf16.mxu0 0
      %1157 = vmatpush1.bf16.msra.mxu0 0
      %1158 = vmatprep.subr.bf16.mxu0 0
      %1159 = vmatpush1.bf16.msra.mxu0 0
      %1160 = vmatprep.subr.bf16.mxu0 0
      %1161 = vmatpush1.bf16.msra.mxu0 0
      %1162 = vmatprep.subr.bf16.mxu0 0
      %1163 = vmatpush1.bf16.msra.mxu0 0
      %1164 = vmatprep.subr.bf16.mxu0 0
      %1165 = vmatpush1.bf16.msra.mxu0 0
      %1166 = vmatprep.subr.bf16.mxu0 0
      %1167 = vmatpush1.bf16.msra.mxu0 0
      %1168 = vmatprep.subr.bf16.mxu0 0
      %1169 = vmatpush1.bf16.msra.mxu0 0
      %1170 = vmatprep.subr.bf16.mxu0 0
      %1171 = vmatpush1.bf16.msra.mxu0 0
      %1172 = vmatprep.subr.bf16.mxu0 0
      %1173 = vmatpush1.bf16.msra.mxu0 0
      %1174 = vmatprep.subr.bf16.mxu0 0
      %1175 = vmatpush1.bf16.msra.mxu0 0
      %1176 = vmatprep.mubr.bf16.mxu0 0
      %1177 = vmatmul.mubr.bf16.gmra.mrb[0].mxu0 %v1142
      %v1178 = vpop.f32.mrb[0].mxu0
      %v1179 = vadd.f32 %v1127, %v1178
      %v1180 = vpop.f32.mrb[0].mxu0
      %v1181 = vpop.f32.mrb[0].mxu0
      %v1182 = vpop.f32.mrb[0].mxu0
      %1183 = vdwg.mxu0
      %v1184 = vmul.f32 %v1179, 0.5
      %v1185 = vmul.f32 %v1179, 0.044715
      %v1186 = vmul.f32 %v1185, %v1179
      %v1187 = vmul.f32 %v1186, %v1179
      %v1188 = vadd.f32 %v1179, %v1187
      %v1189 = vmul.f32 %v1188, 0.7978846
      %v1190 = vtanh.pop %v1189
      %v1191 = vadd.f32 %v1190, 1.0
      %v1192 = vmul.f32 %v1184, %v1191
      %v1193 = vpack.c.bf16 %v1192, %v1192
      %v1194 = vld [vmem:[%s10] sm:$0xf]
      %v1195 = vld [vmem:[%s10 + $0x4] sm:$0xf]
      %v1196 = vld [vmem:[%s10 + $0x8] sm:$0xf]
      %v1197 = vld [vmem:[%s10 + $0xc] sm:$0xf]
      %v1198 = vld [vmem:[%s10 + $0x10] sm:$0xf]
      %v1199 = vld [vmem:[%s10 + $0x14] sm:$0xf]
      %v1200 = vld [vmem:[%s10 + $0x18] sm:$0xf]
      %v1201 = vld [vmem:[%s10 + $0x1c] sm:$0xf]
      %v1202 = vld [vmem:[%s11] sm:$0x1]
      %v1204 = vlaneseq
      %v1205 = vshrl.u32 %v1204, 7
      %v1206 = vsub.s32 0, %v1205
      %v1207 = vrot.slane %v1202, %v1206
      %v1217 = vunpack.c.l.b16 %v1194
      %v1218 = vunpack.c.l.b16 %v1195
      %v1219 = vunpack.c.l.b16 %v1196
      %v1220 = vunpack.c.l.b16 %v1197
      %v1221 = vunpack.c.l.b16 %v1198
      %v1222 = vunpack.c.l.b16 %v1199
      %v1223 = vunpack.c.l.b16 %v1200
      %v1224 = vunpack.c.l.b16 %v1201
      %v1225 = vpack.c.b16 %v1218, %v1217
      %v1226 = vpack.c.b16 %v1220, %v1219
      %v1227 = vpack.c.b16 %v1222, %v1221
      %v1228 = vpack.c.b16 %v1224, %v1223
      %vm1233 = vcmask 523264
      %v1235 = vsel %vm1233, %v1193, 0
      %1237 = vmatprep.subr.bf16.mxu0 0
      %1238 = vmatpush1.bf16.msra.mxu0 %v1225
      %1239 = vmatprep.subr.bf16.mxu0 0
      %1240 = vmatpush1.bf16.msra.mxu0 %v1226
      %1241 = vmatprep.subr.bf16.mxu0 0
      %1242 = vmatpush1.bf16.msra.mxu0 %v1227
      %1243 = vmatprep.subr.bf16.mxu0 0
      %1244 = vmatpush1.bf16.msra.mxu0 %v1228
      %1245 = vmatprep.subr.bf16.mxu0 0
      %1246 = vmatpush1.bf16.msra.mxu0 0
      %1247 = vmatprep.subr.bf16.mxu0 0
      %1248 = vmatpush1.bf16.msra.mxu0 0
      %1249 = vmatprep.subr.bf16.mxu0 0
      %1250 = vmatpush1.bf16.msra.mxu0 0
      %1251 = vmatprep.subr.bf16.mxu0 0
      %1252 = vmatpush1.bf16.msra.mxu0 0
      %1253 = vmatprep.subr.bf16.mxu0 0
      %1254 = vmatpush1.bf16.msra.mxu0 0
      %1255 = vmatprep.subr.bf16.mxu0 0
      %1256 = vmatpush1.bf16.msra.mxu0 0
      %1257 = vmatprep.subr.bf16.mxu0 0
      %1258 = vmatpush1.bf16.msra.mxu0 0
      %1259 = vmatprep.subr.bf16.mxu0 0
      %1260 = vmatpush1.bf16.msra.mxu0 0
      %1261 = vmatprep.subr.bf16.mxu0 0
      %1262 = vmatpush1.bf16.msra.mxu0 0
      %1263 = vmatprep.subr.bf16.mxu0 0
      %1264 = vmatpush1.bf16.msra.mxu0 0
      %1265 = vmatprep.subr.bf16.mxu0 0
      %1266 = vmatpush1.bf16.msra.mxu0 0
      %1267 = vmatprep.subr.bf16.mxu0 0
      %1268 = vmatpush1.bf16.msra.mxu0 0
      %1269 = vmatprep.mubr.bf16.mxu0 0
      %1270 = vmatmul.mubr.bf16.gmra.mrb[0].mxu0 %v1235
      %v1271 = vpop.f32.mrb[0].mxu0
      %v1272 = vadd.f32 %v1207, %v1271
      %v1273 = vpop.f32.mrb[0].mxu0
      %v1274 = vpop.f32.mrb[0].mxu0
      %v1275 = vpop.f32.mrb[0].mxu0
      %1276 = vdwg.mxu0
      %v1277 = vadd.f32 %v1272, %v1116
      %v1278 = vld [vmem:[%s12] sm:$0x1]
      %v1279 = vld [vmem:[%s13] sm:$0x1]
      %v1280 = vsel %vm504, %v1277, 0.0
      %1281 = vadd.xlane.f32.xlu0 %v1280
      %v1282 = vpop.xlane.xlu0 %1281
      %v1283 = vmul.f32 %v1282, %v1089
      %v1284 = vmul.f32 %v1277, %v1277
      %v1285 = vsel %vm504, %v1284, 0.0
      %1286 = vadd.xlane.f32.xlu0 %v1285
      %v1287 = vpop.xlane.xlu0 %1286
      %v1288 = vmul.f32 %v1287, %v1089
      %v1289 = vmul.f32 %v1283, %v1283
      %v1290 = vsub.f32 %v1288, %v1289
      %v1291 = vmax.f32 %v1290, 0.0
      %v1292 = vsub.f32 %v1277, %v1283
      %v1293 = vadd.f32 %v1291, 1e-12
      %v1294 = vrsqrt.pop %v1293
      %v1295 = vmul.f32 %v1292, %v1294
      %v1297 = vlaneseq
      %v1298 = vshrl.u32 %v1297, 7
      %v1299 = vsub.s32 0, %v1298
      %v1300 = vrot.slane %v1278, %v1299
      %v1302 = vmul.f32 %v1295, %v1300
      %v1304 = vlaneseq
      %v1305 = vshrl.u32 %v1304, 7
      %v1306 = vsub.s32 0, %v1305
      %v1307 = vrot.slane %v1279, %v1306
      %v1309 = vadd.f32 %v1302, %v1307
      %v1310 = vpack.c.bf16 %v1309, %v1309
      %vm1311 = vcmask 257024
      %1312 = vst.msk [vmem:[%s476] sm:$0xf] %vm1311, %v1310
      %p1313 = scmp.lt.s32.totalorder %s25, 1
      %s1314 = scalar_select %p1313, %s25, 1
      %s1315 = smul.addr %s1314, 4
      %s1316 = scalar_lea.vmem %s14, %s1315
      // Predicated region
      $region77: #{bert_forward.5} parent=75 // pred_check
        %p1317 = pneg %p347
      $region78: #{bert_forward.5} parent=75 // pred_check_branch
        %1319 = sbr.rel (%p1317) target = $region80
      $region79: #{bert_forward.5} parent=75 // pred_region
        _
      $region80: #{bert_forward.5} parent=75 // pred_fallthru
        _
    $region76: #{bert_forward.5} parent=5 // pred_fallthru
      _
    %p1320 = scmp.le.s32.totalorder 2, %s20
    // Predicated region
    $region81: #{bert_forward.5} parent=5 // pred_check
      %p1321 = pneg %p1320
    $region82: #{bert_forward.5} parent=5 // pred_check_branch
      %1323 = sbr.rel (%p1321) target = $region84
    $region83: #{bert_forward.5} parent=5 // pred_region
      %s1324 = ssub.s32 %s20, 2
      // Predicated region
      $region85: #{bert_forward.5} parent=83 // pred_check
        %p1325 = pneg %p353
      $region86: #{bert_forward.5} parent=83 // pred_check_branch
        %1327 = sbr.rel (%p1325) target = $region88
      $region87: #{bert_forward.5} parent=83 // pred_region
        %p1328 = scmp.lt.s32.totalorder %s26, 1
        %s1329 = scalar_select %p1328, %s26, 1
        %s1330 = smul.addr %s1329, 4
        %s1331 = scalar_lea.vmem %s14, %s1330
      $region88: #{bert_forward.5} parent=83 // pred_fallthru
        _
    $region84: #{bert_forward.5} parent=5 // pred_fallthru
      _
  $region6: #{bert_forward.5} parent=0 // loop_footer
    %s24 = sadd.s32 1, %s20
  $region7: #{bert_forward.5} parent=0 // loop_footer_branch
    %19 = sbr.rel target = $region3
  $region8: #{bert_forward.5} parent=0 // loop_exit
    _

</llo_original>
